<compile_context>
chip_gen: v7x
topology: tpu7x:2x2x1
jax: 0.10.0
libtpu: 0.0.40
codegen_flags: <defaults>
</compile_context>

<pallas_src>
import functools

import jax
import jax.numpy as jnp
import numpy as np
from jax.experimental import pallas as pl
from jax.experimental.pallas import tpu as pltpu

_NEG = -1e30  # finite stand-in for -inf in padded logit columns


def _ann_kernel(x_ref, w1_ref, b1_ref, w2_ref, b2_ref, o_ref):
    """Fused MLP forward for one (tb, Dp) batch tile.

    h      = relu(x @ W1 + b1)
    (dropout: eval-mode identity)
    logits = h @ W2 + b2
    out    = logits - logsumexp(logits, axis=-1, keepdims=True)   # LogSoftmax
    """
    x = x_ref[...]

    # ---- i2h + ReLU (MXU matmul + VPU elementwise) ----
    h = jnp.dot(x, w1_ref[...], preferred_element_type=jnp.float32)
    h = jnp.maximum(h + b1_ref[...], 0.0)          # b1 is (1, Hp), broadcasts

    # ---- dropout ----
    # TODO(synk): training-mode dropout (Bernoulli mask * 1/(1-p) via
    # pltpu.prng_seed/prng_random_bits) omitted; this matches eval semantics.

    # ---- h2o ----
    logits = jnp.dot(h, w2_ref[...], preferred_element_type=jnp.float32)
    logits = logits + b2_ref[...]                  # padded cols carry -1e30 bias

    # ---- numerically-stable log_softmax over last axis ----
    # exp/log run on the EUP slot and the row reductions on the XLU slot, so
    # this epilogue hides under the MXU/DMA work of neighboring tiles.
    m = jnp.max(logits, axis=-1, keepdims=True)
    lse = m + jnp.log(jnp.sum(jnp.exp(logits - m), axis=-1, keepdims=True))
    o_ref[...] = (logits - lse).astype(o_ref.dtype)


def _round_up(v, m):
    return (v + m - 1) // m * m


def _pick_tb(B, D, H, O):
    """Pick the batch tile: large enough to fill the MXU, small enough to keep
    >=2 grid steps when B allows it (v7x dual-TC) and to stay well inside the
    scoped-VMEM defaults of v5e/v6e/v7x."""
    Dp, Hp, Op = (_round_up(v, 128) for v in (D, H, O))
    if B >= 1024:
        tb = 512
    elif B >= 512:
        tb = 256
    else:
        tb = 128
    # Worst-case weights footprint (double-buffered fallback).
    weight_bytes = 2 * 4 * (Dp * Hp + Hp * Op + Hp + Op)
    budget = 24 * 1024 * 1024  # headroom under the 32 MiB scoped default

    def tile_bytes(t):  # double-buffered x/out tiles + f32 intermediates
        return 4 * (2 * t * Dp + 2 * t * Op + t * Hp + t * Op)

    while tb > 128 and weight_bytes + tile_bytes(tb) > budget:
        tb //= 2
    # TODO(synk): if the weights alone ever exceed VMEM (very large D/H), add a
    # K-tiled reduction grid axis over D with an accumulator scratch, or cast
    # the weights to bf16 (then tb must be a multiple of 16).
    return tb


@functools.partial(jax.jit, static_argnames=("tb", "single_buffer_weights"))
def _ann_forward_impl(x, w1, b1, w2, b2, *, tb, single_buffer_weights):
    B, D = x.shape
    H = w1.shape[1]
    O = w2.shape[1]
    Bp = _round_up(B, tb)
    Dp, Hp, Op = (_round_up(v, 128) for v in (D, H, O))

    f32 = jnp.float32
    xp = jnp.pad(x.astype(f32), ((0, Bp - B), (0, Dp - D)))
    w1p = jnp.pad(w1.astype(f32), ((0, Dp - D), (0, Hp - H)))
    b1p = jnp.pad(b1.reshape(1, H).astype(f32), ((0, 0), (0, Hp - H)))
    w2p = jnp.pad(w2.astype(f32), ((0, Hp - H), (0, Op - O)))
    # Padded output columns get a -1e30 bias -> exp() == 0 -> log_softmax over
    # the real columns is exact.
    b2p = jnp.pad(b2.reshape(1, O).astype(f32), ((0, 0), (0, Op - O)),
                  constant_values=_NEG)

    def const_spec(shape):
        # Grid-invariant blocks: keep a single resident copy in VMEM.
        if single_buffer_weights:
            return pl.BlockSpec(shape, lambda i: (0, 0),
                                pipeline_mode=pl.Buffered(1))
        return pl.BlockSpec(shape, lambda i: (0, 0))

    grid = (Bp // tb,)
    cost = pl.CostEstimate(
        flops=2 * Bp * (Dp * Hp + Hp * Op),
        transcendentals=Bp * (Op + 1),
        bytes_accessed=4 * (Bp * Dp + Dp * Hp + Hp + Hp * Op + Op + Bp * Op),
    )

    out_p = pl.pallas_call(
        _ann_kernel,
        out_shape=jax.ShapeDtypeStruct((Bp, Op), f32),
        grid_spec=pltpu.PrefetchScalarGridSpec(
            num_scalar_prefetch=0,
            grid=grid,
            in_specs=[
                pl.BlockSpec((tb, Dp), lambda i: (i, 0)),   # x batch tile
                const_spec((Dp, Hp)),                       # W1 (resident)
                const_spec((1, Hp)),                        # b1
                const_spec((Hp, Op)),                       # W2 (resident)
                const_spec((1, Op)),                        # b2
            ],
            out_specs=pl.BlockSpec((tb, Op), lambda i: (i, 0)),
        ),
        compiler_params=pltpu.CompilerParams(
            dimension_semantics=("parallel",),
        ),
        cost_estimate=cost,
    )(xp, w1p, b1p, w2p, b2p)

    return out_p[:B, :O].astype(x.dtype)


def ann_forward(x, w1, b1, w2, b2, *, tb=None):
    """x: (B, input_size). Returns log-probabilities (B, output_size)."""
    B, D = x.shape
    H = w1.shape[1]
    O = w2.shape[1]
    if tb is None:
        tb = _pick_tb(B, D, H, O)
    try:
        out = _ann_forward_impl(x, w1, b1, w2, b2, tb=tb,
                                single_buffer_weights=True)
        jax.block_until_ready(out)
        return out
    except Exception:
        # Fallback if this JAX build rejects single-buffering (pl.Buffered(1))
        # on the TPU auto-pipeline: default (double) buffering for weights.
        return _ann_forward_impl(x, w1, b1, w2, b2, tb=tb,
                                 single_buffer_weights=False)


def _reference(x, w1, b1, w2, b2):
    h = jnp.maximum(x @ w1 + b1, 0.0)
    return jax.nn.log_softmax(h @ w2 + b2, axis=-1)


if __name__ == "__main__":
    # Small shapes consistent with the module's __init__ kwargs.
    batch = 256          # -> 2 parallel grid steps with tb=128 (uses both v7x TCs)
    input_size = 32
    hidden_size = 64
    output_size = 16

    key = jax.random.PRNGKey(0)
    kx, kw1, kb1, kw2, kb2 = jax.random.split(key, 5)

    x = jax.random.normal(kx, (batch, input_size), dtype=jnp.float32)
    # Deterministic parameter init (uniform, like nn.Linear's default range).
    lim1 = 1.0 / np.sqrt(input_size)
    lim2 = 1.0 / np.sqrt(hidden_size)
    w1 = jax.random.uniform(kw1, (input_size, hidden_size), jnp.float32, -lim1, lim1)
    b1 = jax.random.uniform(kb1, (1, hidden_size), jnp.float32, -lim1, lim1)
    w2 = jax.random.uniform(kw2, (hidden_size, output_size), jnp.float32, -lim2, lim2)
    b2 = jax.random.uniform(kb2, (1, output_size), jnp.float32, -lim2, lim2)

    out = jax.block_until_ready(ann_forward(x, w1, b1, w2, b2))
    ref = jax.block_until_ready(_reference(x, w1, b1, w2, b2))
    np.testing.assert_allclose(np.asarray(out), np.asarray(ref), atol=1e-5, rtol=1e-5)

    # Ragged batch (exercises the batch-padding path).
    out_s = jax.block_until_ready(ann_forward(x[:10], w1, b1, w2, b2))
    ref_s = jax.block_until_ready(_reference(x[:10], w1, b1, w2, b2))
    np.testing.assert_allclose(np.asarray(out_s), np.asarray(ref_s), atol=1e-5, rtol=1e-5)

    print("KERNEL_OK")
</pallas_src>

<mosaic_0001>
module attributes {stable_mosaic.version = 11 : i64} {
  func.func @_ann_kernel(%arg0: i32, %arg1: memref<128x128xf32, #tpu.memory_space<vmem>>, %arg2: memref<128x128xf32, #tpu.memory_space<vmem>>, %arg3: memref<1x128xf32, #tpu.memory_space<vmem>>, %arg4: memref<128x128xf32, #tpu.memory_space<vmem>>, %arg5: memref<1x128xf32, #tpu.memory_space<vmem>>, %arg6: memref<128x128xf32, #tpu.memory_space<vmem>>) attributes {dimension_semantics = [#tpu.dimension_semantics<parallel>], iteration_bounds = array<i64: 2>, scalar_prefetch = 0 : i64, scratch_operands = 0 : i64, tpu.core_type = #tpu.core_type<tc>, window_params = [{transform_indices = @transform_0, window_bounds = array<i64: 128, 128>}, {pipeline_mode = #tpu.pipeline_mode<synchronous>, transform_indices = @transform_1, window_bounds = array<i64: 128, 128>}, {pipeline_mode = #tpu.pipeline_mode<synchronous>, transform_indices = @transform_2, window_bounds = array<i64: 1, 128>}, {pipeline_mode = #tpu.pipeline_mode<synchronous>, transform_indices = @transform_3, window_bounds = array<i64: 128, 128>}, {pipeline_mode = #tpu.pipeline_mode<synchronous>, transform_indices = @transform_4, window_bounds = array<i64: 1, 128>}, {transform_indices = @transform_5, window_bounds = array<i64: 128, 128>}]} {
    %c0 = arith.constant 0 : index
    %c0_0 = arith.constant 0 : index
    %0 = vector.load %arg1[%c0, %c0_0] : memref<128x128xf32, #tpu.memory_space<vmem>>, vector<128x128xf32>
    %c0_1 = arith.constant 0 : index
    %c0_2 = arith.constant 0 : index
    %1 = vector.load %arg2[%c0_1, %c0_2] : memref<128x128xf32, #tpu.memory_space<vmem>>, vector<128x128xf32>
    %cst = arith.constant dense<0.000000e+00> : vector<128x128xf32>
    %2 = tpu.matmul %0, %1, %cst {dimension_numbers = #tpu.dot_dimension_numbers<[1], [0], [0], [1], [0, 0, 1, 1], [], []>} : vector<128x128xf32>, vector<128x128xf32>, vector<128x128xf32> -> vector<128x128xf32>
    %c0_3 = arith.constant 0 : index
    %c0_4 = arith.constant 0 : index
    %3 = vector.load %arg3[%c0_3, %c0_4] : memref<1x128xf32, #tpu.memory_space<vmem>>, vector<1x128xf32>
    %4 = vector.broadcast %3 : vector<1x128xf32> to vector<128x128xf32>
    %5 = arith.addf %2, %4 : vector<128x128xf32>
    %cst_5 = arith.constant 0.000000e+00 : f32
    %6 = vector.broadcast %cst_5 : f32 to vector<128x128xf32>
    %7 = arith.maximumf %5, %6 : vector<128x128xf32>
    %c0_6 = arith.constant 0 : index
    %c0_7 = arith.constant 0 : index
    %8 = vector.load %arg4[%c0_6, %c0_7] : memref<128x128xf32, #tpu.memory_space<vmem>>, vector<128x128xf32>
    %cst_8 = arith.constant dense<0.000000e+00> : vector<128x128xf32>
    %9 = tpu.matmul %7, %8, %cst_8 {dimension_numbers = #tpu.dot_dimension_numbers<[1], [0], [0], [1], [0, 0, 1, 1], [], []>} : vector<128x128xf32>, vector<128x128xf32>, vector<128x128xf32> -> vector<128x128xf32>
    %c0_9 = arith.constant 0 : index
    %c0_10 = arith.constant 0 : index
    %10 = vector.load %arg5[%c0_9, %c0_10] : memref<1x128xf32, #tpu.memory_space<vmem>>, vector<1x128xf32>
    %11 = vector.broadcast %10 : vector<1x128xf32> to vector<128x128xf32>
    %12 = arith.addf %9, %11 : vector<128x128xf32>
    %cst_11 = arith.constant dense<0xFF800000> : vector<128xf32>
    %13 = vector.multi_reduction <maximumf>, %12, %cst_11 [1] : vector<128x128xf32> to vector<128xf32>
    %14 = vector.shape_cast %13 : vector<128xf32> to vector<128x1xf32>
    %15 = vector.broadcast %14 : vector<128x1xf32> to vector<128x128xf32>
    %16 = arith.subf %12, %15 : vector<128x128xf32>
    %17 = math.exp %16 : vector<128x128xf32>
    %cst_12 = arith.constant dense<0.000000e+00> : vector<128xf32>
    %18 = vector.multi_reduction <add>, %17, %cst_12 [1] : vector<128x128xf32> to vector<128xf32>
    %19 = vector.shape_cast %18 : vector<128xf32> to vector<128x1xf32>
    %20 = math.log %19 : vector<128x1xf32>
    %21 = arith.addf %14, %20 : vector<128x1xf32>
    %22 = vector.broadcast %21 : vector<128x1xf32> to vector<128x128xf32>
    %23 = arith.subf %12, %22 : vector<128x128xf32>
    %c0_13 = arith.constant 0 : index
    %c0_14 = arith.constant 0 : index
    %24 = vector.load %arg6[%c0_13, %c0_14] : memref<128x128xf32, #tpu.memory_space<vmem>>, vector<128x128xf32>
    tpu.vector_store %arg6[%c0_13, %c0_14], %23 {strides = array<i32>} : memref<128x128xf32, #tpu.memory_space<vmem>>, vector<128x128xf32>,
    return
  }
  func.func @transform_0(%arg0: i32) -> (i32, i32) {
    %c0_i32 = arith.constant 0 : i32
    %c0_i32_0 = arith.constant 0 : i32
    return %arg0, %c0_i32 : i32, i32
  }
  func.func @transform_1(%arg0: i32) -> (i32, i32) {
    %c0_i32 = arith.constant 0 : i32
    %c0_i32_0 = arith.constant 0 : i32
    %c0_i32_1 = arith.constant 0 : i32
    return %c0_i32, %c0_i32_0 : i32, i32
  }
  func.func @transform_2(%arg0: i32) -> (i32, i32) {
    %c0_i32 = arith.constant 0 : i32
    %c0_i32_0 = arith.constant 0 : i32
    %c0_i32_1 = arith.constant 0 : i32
    return %c0_i32, %c0_i32_0 : i32, i32
  }
  func.func @transform_3(%arg0: i32) -> (i32, i32) {
    %c0_i32 = arith.constant 0 : i32
    %c0_i32_0 = arith.constant 0 : i32
    %c0_i32_1 = arith.constant 0 : i32
    return %c0_i32, %c0_i32_0 : i32, i32
  }
  func.func @transform_4(%arg0: i32) -> (i32, i32) {
    %c0_i32 = arith.constant 0 : i32
    %c0_i32_0 = arith.constant 0 : i32
    %c0_i32_1 = arith.constant 0 : i32
    return %c0_i32, %c0_i32_0 : i32, i32
  }
  func.func @transform_5(%arg0: i32) -> (i32, i32) {
    %c0_i32 = arith.constant 0 : i32
    %c0_i32_0 = arith.constant 0 : i32
    return %arg0, %c0_i32 : i32, i32
  }
}

module attributes {stable_mosaic.version = 11 : i64} {
  func.func @_ann_kernel(%arg0: i32, %arg1: memref<128x128xf32, #tpu.memory_space<vmem>>, %arg2: memref<128x128xf32, #tpu.memory_space<vmem>>, %arg3: memref<1x128xf32, #tpu.memory_space<vmem>>, %arg4: memref<128x128xf32, #tpu.memory_space<vmem>>, %arg5: memref<1x128xf32, #tpu.memory_space<vmem>>, %arg6: memref<128x128xf32, #tpu.memory_space<vmem>>) attributes {dimension_semantics = [#tpu.dimension_semantics<parallel>], iteration_bounds = array<i64: 2>, scalar_prefetch = 0 : i64, scratch_operands = 0 : i64, tpu.core_type = #tpu.core_type<tc>, window_params = [{transform_indices = @transform_0, window_bounds = array<i64: 128, 128>}, {pipeline_mode = #tpu.pipeline_mode<synchronous>, transform_indices = @transform_1, window_bounds = array<i64: 128, 128>}, {pipeline_mode = #tpu.pipeline_mode<synchronous>, transform_indices = @transform_2, window_bounds = array<i64: 1, 128>}, {pipeline_mode = #tpu.pipeline_mode<synchronous>, transform_indices = @transform_3, window_bounds = array<i64: 128, 128>}, {pipeline_mode = #tpu.pipeline_mode<synchronous>, transform_indices = @transform_4, window_bounds = array<i64: 1, 128>}, {transform_indices = @transform_5, window_bounds = array<i64: 128, 128>}]} {
    %c0 = arith.constant 0 : index
    %c0_0 = arith.constant 0 : index
    %0 = vector.load %arg1[%c0, %c0_0] : memref<128x128xf32, #tpu.memory_space<vmem>>, vector<128x128xf32>
    %c0_1 = arith.constant 0 : index
    %c0_2 = arith.constant 0 : index
    %1 = vector.load %arg2[%c0_1, %c0_2] : memref<128x128xf32, #tpu.memory_space<vmem>>, vector<128x128xf32>
    %cst = arith.constant dense<0.000000e+00> : vector<128x128xf32>
    %2 = tpu.matmul %0, %1, %cst {dimension_numbers = #tpu.dot_dimension_numbers<[1], [0], [0], [1], [0, 0, 1, 1], [], []>} : vector<128x128xf32>, vector<128x128xf32>, vector<128x128xf32> -> vector<128x128xf32>
    %c0_3 = arith.constant 0 : index
    %c0_4 = arith.constant 0 : index
    %3 = vector.load %arg3[%c0_3, %c0_4] : memref<1x128xf32, #tpu.memory_space<vmem>>, vector<1x128xf32>
    %4 = vector.broadcast %3 : vector<1x128xf32> to vector<128x128xf32>
    %5 = arith.addf %2, %4 : vector<128x128xf32>
    %cst_5 = arith.constant 0.000000e+00 : f32
    %6 = vector.broadcast %cst_5 : f32 to vector<128x128xf32>
    %7 = arith.maximumf %5, %6 : vector<128x128xf32>
    %c0_6 = arith.constant 0 : index
    %c0_7 = arith.constant 0 : index
    %8 = vector.load %arg4[%c0_6, %c0_7] : memref<128x128xf32, #tpu.memory_space<vmem>>, vector<128x128xf32>
    %cst_8 = arith.constant dense<0.000000e+00> : vector<128x128xf32>
    %9 = tpu.matmul %7, %8, %cst_8 {dimension_numbers = #tpu.dot_dimension_numbers<[1], [0], [0], [1], [0, 0, 1, 1], [], []>} : vector<128x128xf32>, vector<128x128xf32>, vector<128x128xf32> -> vector<128x128xf32>
    %c0_9 = arith.constant 0 : index
    %c0_10 = arith.constant 0 : index
    %10 = vector.load %arg5[%c0_9, %c0_10] : memref<1x128xf32, #tpu.memory_space<vmem>>, vector<1x128xf32>
    %11 = vector.broadcast %10 : vector<1x128xf32> to vector<128x128xf32>
    %12 = arith.addf %9, %11 : vector<128x128xf32>
    %cst_11 = arith.constant dense<0xFF800000> : vector<128xf32>
    %13 = vector.multi_reduction <maximumf>, %12, %cst_11 [1] : vector<128x128xf32> to vector<128xf32>
    %14 = vector.shape_cast %13 : vector<128xf32> to vector<128x1xf32>
    %15 = vector.broadcast %14 : vector<128x1xf32> to vector<128x128xf32>
    %16 = arith.subf %12, %15 : vector<128x128xf32>
    %17 = math.exp %16 : vector<128x128xf32>
    %cst_12 = arith.constant dense<0.000000e+00> : vector<128xf32>
    %18 = vector.multi_reduction <add>, %17, %cst_12 [1] : vector<128x128xf32> to vector<128xf32>
    %19 = vector.shape_cast %18 : vector<128xf32> to vector<128x1xf32>
    %20 = math.log %19 : vector<128x1xf32>
    %21 = arith.addf %14, %20 : vector<128x1xf32>
    %22 = vector.broadcast %21 : vector<128x1xf32> to vector<128x128xf32>
    %23 = arith.subf %12, %22 : vector<128x128xf32>
    %c0_13 = arith.constant 0 : index
    %c0_14 = arith.constant 0 : index
    %24 = vector.load %arg6[%c0_13, %c0_14] : memref<128x128xf32, #tpu.memory_space<vmem>>, vector<128x128xf32>
    tpu.vector_store %arg6[%c0_13, %c0_14], %23 {strides = array<i32>} : memref<128x128xf32, #tpu.memory_space<vmem>>, vector<128x128xf32>,
    return
  }
  func.func @transform_0(%arg0: i32) -> (i32, i32) {
    %c0_i32 = arith.constant 0 : i32
    %c0_i32_0 = arith.constant 0 : i32
    return %arg0, %c0_i32 : i32, i32
  }
  func.func @transform_1(%arg0: i32) -> (i32, i32) {
    %c0_i32 = arith.constant 0 : i32
    %c0_i32_0 = arith.constant 0 : i32
    %c0_i32_1 = arith.constant 0 : i32
    return %c0_i32, %c0_i32_0 : i32, i32
  }
  func.func @transform_2(%arg0: i32) -> (i32, i32) {
    %c0_i32 = arith.constant 0 : i32
    %c0_i32_0 = arith.constant 0 : i32
    %c0_i32_1 = arith.constant 0 : i32
    return %c0_i32, %c0_i32_0 : i32, i32
  }
  func.func @transform_3(%arg0: i32) -> (i32, i32) {
    %c0_i32 = arith.constant 0 : i32
    %c0_i32_0 = arith.constant 0 : i32
    %c0_i32_1 = arith.constant 0 : i32
    return %c0_i32, %c0_i32_0 : i32, i32
  }
  func.func @transform_4(%arg0: i32) -> (i32, i32) {
    %c0_i32 = arith.constant 0 : i32
    %c0_i32_0 = arith.constant 0 : i32
    %c0_i32_1 = arith.constant 0 : i32
    return %c0_i32, %c0_i32_0 : i32, i32
  }
  func.func @transform_5(%arg0: i32) -> (i32, i32) {
    %c0_i32 = arith.constant 0 : i32
    %c0_i32_0 = arith.constant 0 : i32
    return %arg0, %c0_i32 : i32, i32
  }
}

</mosaic_0001>

<llo_original>
// kernel: _ann_forward_impl.1
$region0: #{_ann_forward_impl.1}
  #allocation0 [shape = 'u32[]', space=smem, size = 0x4, offset = 0x4, fixed_abs, tag = 'smem constant byte address 0x4 - core index']
  #allocation1 [shape = 'u32[144,128]{1,0:T(1,128)}', space=vmem, size = 0x12000, scoped, tag = 'internal scratch']
  %s0 = inlined_call_operand.vmem [shape: f32[256,128], index: 0, kind: input, shape index: {}]
  %s1 = inlined_call_operand.vmem [shape: f32[128,128], index: 1, kind: input, shape index: {}]
  %s2 = inlined_call_operand.vmem [shape: f32[1,128], index: 2, kind: input, shape index: {}]
  %s3 = inlined_call_operand.vmem [shape: f32[128,128], index: 3, kind: input, shape index: {}]
  %s4 = inlined_call_operand.vmem [shape: f32[1,128], index: 4, kind: input, shape index: {}]
  %s5 = inlined_call_operand.vmem [shape: f32[256,128], index: 5, kind: output, shape index: {}]
  %s6 = sld [smem:[#allocation0]]
  $region53: #{_ann_forward_impl.1} parent=0
    _
  %s8 = ssub.s32 1, %s6
  %s9 = scalar_select 0, %s8, %s6
  loop: start=0, step=1, limit=4
  $region2: #{_ann_forward_impl.1} parent=0 // loop_pre_header
    _
  $region3: #{_ann_forward_impl.1} parent=0 // loop_header
    %s11 = sphi 0, %s15
    %p12 = scmp.ge.s32.totalorder %s11, 4
    %s21 = sphi 0, %s23
    %s24 = sphi 0, %s21
    %s25 = sphi 0, %s24
    %s41 = sphi 0, %s25
    %s45 = sphi 0, %s45
    %s47 = sphi 0, %s45
    %s48 = sphi 0, %s47
    %s62 = sphi 0, %s48
    %s66 = sphi 0, %s66
    %s68 = sphi 0, %s66
    %s69 = sphi 0, %s68
    %s83 = sphi 0, %s69
    %s87 = sphi 0, %s87
    %s89 = sphi 0, %s87
    %s90 = sphi 0, %s89
    %s104 = sphi 0, %s90
    %s108 = sphi 0, %s108
    %s110 = sphi 0, %s108
    %s111 = sphi 0, %s110
    %s125 = sphi 0, %s111
    %s131 = sphi 0, %s133
    %s134 = sphi 0, %s131
    %s135 = sphi 0, %s134
    %s151 = sphi 0, %s135
  $region4: #{_ann_forward_impl.1} parent=0 // loop_header_branch
    %14 = sbr.rel (%p12) target = $region8
  $region5: #{_ann_forward_impl.1} parent=0 // loop_body
    %s16 = ssub.s32 %s11, 1
    %s17 = ssub.s32 %s11, 2
    %s18 = sadd.s32 %s11, 1
    %s19 = ssub.s32 %s11, %s18
    %p20 = scmp.eq.s32.totalorder %s19, 0
    %s22 = sadd.s32 %s21, 1
    %s23 = scalar_select %p20, %s21, %s22
    %p26 = pneg %p20
    %p27 = scmp.eq.s32.totalorder %s11, 1
    %p28 = por %p26, %p27
    %p29 = scmp.ne.s32.totalorder %s21, %s24
    %p30 = scmp.eq.s32.totalorder %s11, 0
    %p31 = por %p29, %p30
    %p32 = scmp.ne.s32.totalorder %s21, %s24
    %p33 = scmp.eq.s32.totalorder %s16, 1
    %p34 = por %p32, %p33
    %p35 = scmp.ne.s32.totalorder %s24, %s25
    %p36 = scmp.eq.s32.totalorder %s16, 0
    %p37 = por %p35, %p36
    %p38 = scmp.ne.s32.totalorder %s24, %s25
    %p39 = scmp.eq.s32.totalorder %s17, 1
    %p40 = por %p38, %p39
    %p42 = scmp.ne.s32.totalorder %s25, %s41
    %p43 = scmp.eq.s32.totalorder %s17, 0
    %p44 = por %p42, %p43
    %s46 = sadd.s32 %s45, 1
    %p49 = scmp.eq.s32.totalorder %s11, 1
    %p50 = scmp.ne.s32.totalorder %s45, %s47
    %p51 = scmp.eq.s32.totalorder %s11, 0
    %p52 = por %p50, %p51
    %p53 = scmp.ne.s32.totalorder %s45, %s47
    %p54 = scmp.eq.s32.totalorder %s16, 1
    %p55 = por %p53, %p54
    %p56 = scmp.ne.s32.totalorder %s47, %s48
    %p57 = scmp.eq.s32.totalorder %s16, 0
    %p58 = por %p56, %p57
    %p59 = scmp.ne.s32.totalorder %s47, %s48
    %p60 = scmp.eq.s32.totalorder %s17, 1
    %p61 = por %p59, %p60
    %p63 = scmp.ne.s32.totalorder %s48, %s62
    %p64 = scmp.eq.s32.totalorder %s17, 0
    %p65 = por %p63, %p64
    %s67 = sadd.s32 %s66, 1
    %p70 = scmp.eq.s32.totalorder %s11, 1
    %p71 = scmp.ne.s32.totalorder %s66, %s68
    %p72 = scmp.eq.s32.totalorder %s11, 0
    %p73 = por %p71, %p72
    %p74 = scmp.ne.s32.totalorder %s66, %s68
    %p75 = scmp.eq.s32.totalorder %s16, 1
    %p76 = por %p74, %p75
    %p77 = scmp.ne.s32.totalorder %s68, %s69
    %p78 = scmp.eq.s32.totalorder %s16, 0
    %p79 = por %p77, %p78
    %p80 = scmp.ne.s32.totalorder %s68, %s69
    %p81 = scmp.eq.s32.totalorder %s17, 1
    %p82 = por %p80, %p81
    %p84 = scmp.ne.s32.totalorder %s69, %s83
    %p85 = scmp.eq.s32.totalorder %s17, 0
    %p86 = por %p84, %p85
    %s88 = sadd.s32 %s87, 1
    %p91 = scmp.eq.s32.totalorder %s11, 1
    %p92 = scmp.ne.s32.totalorder %s87, %s89
    %p93 = scmp.eq.s32.totalorder %s11, 0
    %p94 = por %p92, %p93
    %p95 = scmp.ne.s32.totalorder %s87, %s89
    %p96 = scmp.eq.s32.totalorder %s16, 1
    %p97 = por %p95, %p96
    %p98 = scmp.ne.s32.totalorder %s89, %s90
    %p99 = scmp.eq.s32.totalorder %s16, 0
    %p100 = por %p98, %p99
    %p101 = scmp.ne.s32.totalorder %s89, %s90
    %p102 = scmp.eq.s32.totalorder %s17, 1
    %p103 = por %p101, %p102
    %p105 = scmp.ne.s32.totalorder %s90, %s104
    %p106 = scmp.eq.s32.totalorder %s17, 0
    %p107 = por %p105, %p106
    %s109 = sadd.s32 %s108, 1
    %p112 = scmp.eq.s32.totalorder %s11, 1
    %p113 = scmp.ne.s32.totalorder %s108, %s110
    %p114 = scmp.eq.s32.totalorder %s11, 0
    %p115 = por %p113, %p114
    %p116 = scmp.ne.s32.totalorder %s108, %s110
    %p117 = scmp.eq.s32.totalorder %s16, 1
    %p118 = por %p116, %p117
    %p119 = scmp.ne.s32.totalorder %s110, %s111
    %p120 = scmp.eq.s32.totalorder %s16, 0
    %p121 = por %p119, %p120
    %p122 = scmp.ne.s32.totalorder %s110, %s111
    %p123 = scmp.eq.s32.totalorder %s17, 1
    %p124 = por %p122, %p123
    %p126 = scmp.ne.s32.totalorder %s111, %s125
    %p127 = scmp.eq.s32.totalorder %s17, 0
    %p128 = por %p126, %p127
    %s129 = ssub.s32 %s11, %s18
    %p130 = scmp.eq.s32.totalorder %s129, 0
    %s132 = sadd.s32 %s131, 1
    %s133 = scalar_select %p130, %s131, %s132
    %p136 = pneg %p130
    %p137 = scmp.eq.s32.totalorder %s11, 1
    %p138 = por %p136, %p137
    %p139 = scmp.ne.s32.totalorder %s131, %s134
    %p140 = scmp.eq.s32.totalorder %s11, 0
    %p141 = por %p139, %p140
    %p142 = scmp.ne.s32.totalorder %s131, %s134
    %p143 = scmp.eq.s32.totalorder %s16, 1
    %p144 = por %p142, %p143
    %p145 = scmp.ne.s32.totalorder %s134, %s135
    %p146 = scmp.eq.s32.totalorder %s16, 0
    %p147 = por %p145, %p146
    %p148 = scmp.ne.s32.totalorder %s134, %s135
    %p149 = scmp.eq.s32.totalorder %s17, 1
    %p150 = por %p148, %p149
    %p152 = scmp.ne.s32.totalorder %s135, %s151
    %p153 = scmp.eq.s32.totalorder %s17, 0
    %p154 = por %p152, %p153
    %p155 = scmp.le.s32.totalorder 1, %s11
    %p156 = scmp.lt.s32.totalorder %s11, 3
    %p157 = pnand %p155, %p156
    %p158 = pneg %p157
    // Predicated region
    $region9: #{_ann_forward_impl.1} parent=5 // pred_check
      _
    $region10: #{_ann_forward_impl.1} parent=5 // pred_check_branch
      %160 = sbr.rel (%p157) target = $region12
    $region11: #{_ann_forward_impl.1} parent=5 // pred_region
      %s161 = ssub.s32 %s11, 1
      // Predicated region
      $region13: #{_ann_forward_impl.1} parent=11 // pred_check
        %p162 = pneg %p58
      $region14: #{_ann_forward_impl.1} parent=11 // pred_check_branch
        %164 = sbr.rel (%p162) target = $region16
      $region15: #{_ann_forward_impl.1} parent=11 // pred_region
        _
      $region16: #{_ann_forward_impl.1} parent=11 // pred_fallthru
        _
      // Predicated region
      $region17: #{_ann_forward_impl.1} parent=11 // pred_check
        %p165 = pneg %p79
      $region18: #{_ann_forward_impl.1} parent=11 // pred_check_branch
        %167 = sbr.rel (%p165) target = $region20
      $region19: #{_ann_forward_impl.1} parent=11 // pred_region
        _
      $region20: #{_ann_forward_impl.1} parent=11 // pred_fallthru
        _
      // Predicated region
      $region21: #{_ann_forward_impl.1} parent=11 // pred_check
        %p168 = pneg %p100
      $region22: #{_ann_forward_impl.1} parent=11 // pred_check_branch
        %170 = sbr.rel (%p168) target = $region24
      $region23: #{_ann_forward_impl.1} parent=11 // pred_region
        _
      $region24: #{_ann_forward_impl.1} parent=11 // pred_fallthru
        _
      // Predicated region
      $region25: #{_ann_forward_impl.1} parent=11 // pred_check
        %p171 = pneg %p121
      $region26: #{_ann_forward_impl.1} parent=11 // pred_check_branch
        %173 = sbr.rel (%p171) target = $region28
      $region27: #{_ann_forward_impl.1} parent=11 // pred_region
        _
      $region28: #{_ann_forward_impl.1} parent=11 // pred_fallthru
        _
    $region12: #{_ann_forward_impl.1} parent=5 // pred_fallthru
      _
    %p174 = scmp.lt.s32.totalorder %s11, 2
    // Predicated region
    $region29: #{_ann_forward_impl.1} parent=5 // pred_check
      %p175 = pneg %p174
    $region30: #{_ann_forward_impl.1} parent=5 // pred_check_branch
      %177 = sbr.rel (%p175) target = $region32
    $region31: #{_ann_forward_impl.1} parent=5 // pred_region
      // Predicated region
      $region33: #{_ann_forward_impl.1} parent=31 // pred_check
        %p178 = pneg %p31
      $region34: #{_ann_forward_impl.1} parent=31 // pred_check_branch
        %180 = sbr.rel (%p178) target = $region36
      $region35: #{_ann_forward_impl.1} parent=31 // pred_region
        %s181 = smul.u32 16, %s11
        %p182 = scmp.lt.s32.totalorder %s181, 31
        %s183 = scalar_select %p182, %s181, 31
        %s184 = smul.addr %s183, 8
        %s185 = scalar_lea.vmem %s0, %s184
        %s186 = smul.u32 16, %s11
      $region36: #{_ann_forward_impl.1} parent=31 // pred_fallthru
        _
    $region32: #{_ann_forward_impl.1} parent=5 // pred_fallthru
      _
    %p187 = scmp.le.s32.totalorder 1, %s11
    %p188 = scmp.lt.s32.totalorder %s11, 3
    %p189 = pnand %p187, %p188
    %p190 = pneg %p189
    // Predicated region
    $region37: #{_ann_forward_impl.1} parent=5 // pred_check
      _
    $region38: #{_ann_forward_impl.1} parent=5 // pred_check_branch
      %192 = sbr.rel (%p189) target = $region40
    $region39: #{_ann_forward_impl.1} parent=5 // pred_region
      %s193 = ssub.s32 %s11, 1
      %s194 = smul.u32 16, %s16
      %p195 = scmp.lt.s32.totalorder %s194, 31
      %s196 = scalar_select %p195, %s194, 31
      %s197 = smul.addr %s196, 8
      %s198 = scalar_lea.vmem %s0, %s197
      %p199 = pneg %p37
      %p200 = pneg %p34
      %p201 = pneg %p58
      %p202 = pneg %p55
      %p203 = pneg %p79
      %p204 = pneg %p76
      %p205 = pneg %p100
      %p206 = pneg %p97
      %p207 = pneg %p121
      %p208 = pneg %p118
      %p209 = pneg %p147
      %p210 = pneg %p144
      %s211 = smul.u32 16, %s16
      %p212 = scmp.lt.s32.totalorder %s211, 31
      %s213 = scalar_select %p212, %s211, 31
      %s214 = smul.addr %s213, 8
      %s215 = scalar_lea.vmem %s5, %s214
      %s216 = smul.u32 16, %s16
      %p217 = scmp.lt.s32.totalorder %s216, 31
      %s218 = scalar_select %p217, %s216, 31
      %s219 = smul.addr %s218, 8
      %s220 = scalar_lea.vmem %s0, %s219
      %s221 = smul.u32 16, %s16
      %s222 = smul.u32 16, %s16
      %p223 = scmp.lt.s32.totalorder %s222, 31
      %s224 = scalar_select %p223, %s222, 31
      %s225 = smul.addr %s224, 8
      %s226 = scalar_lea.vmem %s5, %s225
      %s227 = smul.u32 16, %s16
      %v228 = vld [vmem:[%s220] sm:$0xff]
      %v229 = vld [vmem:[%s220 + $0x8] sm:$0xff]
      %v230 = vld [vmem:[%s220 + $0x10] sm:$0xff]
      %v231 = vld [vmem:[%s220 + $0x18] sm:$0xff]
      %v232 = vld [vmem:[%s220 + $0x20] sm:$0xff]
      %v233 = vld [vmem:[%s220 + $0x28] sm:$0xff]
      %v234 = vld [vmem:[%s220 + $0x30] sm:$0xff]
      %v235 = vld [vmem:[%s220 + $0x38] sm:$0xff]
      %v236 = vld [vmem:[%s220 + $0x40] sm:$0xff]
      %v237 = vld [vmem:[%s220 + $0x48] sm:$0xff]
      %v238 = vld [vmem:[%s220 + $0x50] sm:$0xff]
      %v239 = vld [vmem:[%s220 + $0x58] sm:$0xff]
      %v240 = vld [vmem:[%s220 + $0x60] sm:$0xff]
      %v241 = vld [vmem:[%s220 + $0x68] sm:$0xff]
      %v242 = vld [vmem:[%s220 + $0x70] sm:$0xff]
      %v243 = vld [vmem:[%s220 + $0x78] sm:$0xff]
      %v244 = vld [vmem:[%s1] sm:$0xff]
      %v245 = vld [vmem:[%s1 + $0x8] sm:$0xff]
      %v246 = vld [vmem:[%s1 + $0x10] sm:$0xff]
      %v247 = vld [vmem:[%s1 + $0x18] sm:$0xff]
      %v248 = vld [vmem:[%s1 + $0x20] sm:$0xff]
      %v249 = vld [vmem:[%s1 + $0x28] sm:$0xff]
      %v250 = vld [vmem:[%s1 + $0x30] sm:$0xff]
      %v251 = vld [vmem:[%s1 + $0x38] sm:$0xff]
      %v252 = vld [vmem:[%s1 + $0x40] sm:$0xff]
      %v253 = vld [vmem:[%s1 + $0x48] sm:$0xff]
      %v254 = vld [vmem:[%s1 + $0x50] sm:$0xff]
      %v255 = vld [vmem:[%s1 + $0x58] sm:$0xff]
      %v256 = vld [vmem:[%s1 + $0x60] sm:$0xff]
      %v257 = vld [vmem:[%s1 + $0x68] sm:$0xff]
      %v258 = vld [vmem:[%s1 + $0x70] sm:$0xff]
      %v259 = vld [vmem:[%s1 + $0x78] sm:$0xff]
      %v260 = vld [vmem:[%s2] sm:$0x1]
      %v262 = vlaneseq
      %v263 = vshrl.u32 %v262, 7
      %v264 = vsub.s32 0, %v263
      %v265 = vrot.slane %v260, %v264
      %267 = vmatprep.subr.mxu0 0.0
      %268 = vmatpush1.msra.mxu0 %v244
      %269 = vmatprep.subr.mxu0 0.0
      %270 = vmatpush1.msra.mxu0 %v245
      %271 = vmatprep.subr.mxu0 0.0
      %272 = vmatpush1.msra.mxu0 %v246
      %273 = vmatprep.subr.mxu0 0.0
      %274 = vmatpush1.msra.mxu0 %v247
      %275 = vmatprep.subr.mxu0 0.0
      %276 = vmatpush1.msra.mxu0 %v248
      %277 = vmatprep.subr.mxu0 0.0
      %278 = vmatpush1.msra.mxu0 %v249
      %279 = vmatprep.subr.mxu0 0.0
      %280 = vmatpush1.msra.mxu0 %v250
      %281 = vmatprep.subr.mxu0 0.0
      %282 = vmatpush1.msra.mxu0 %v251
      %283 = vmatprep.subr.mxu0 0.0
      %284 = vmatpush1.msra.mxu0 %v252
      %285 = vmatprep.subr.mxu0 0.0
      %286 = vmatpush1.msra.mxu0 %v253
      %287 = vmatprep.subr.mxu0 0.0
      %288 = vmatpush1.msra.mxu0 %v254
      %289 = vmatprep.subr.mxu0 0.0
      %290 = vmatpush1.msra.mxu0 %v255
      %291 = vmatprep.subr.mxu0 0.0
      %292 = vmatpush1.msra.mxu0 %v256
      %293 = vmatprep.subr.mxu0 0.0
      %294 = vmatpush1.msra.mxu0 %v257
      %295 = vmatprep.subr.mxu0 0.0
      %296 = vmatpush1.msra.mxu0 %v258
      %297 = vmatprep.subr.mxu0 0.0
      %298 = vmatpush1.msra.mxu0 %v259
      %299 = vmatprep.subr.mxu0 0.0
      %300 = vmatpush1.msra.mxu0 0.0
      %301 = vmatprep.subr.mxu0 0.0
      %302 = vmatpush1.msra.mxu0 0.0
      %303 = vmatprep.subr.mxu0 0.0
      %304 = vmatpush1.msra.mxu0 0.0
      %305 = vmatprep.subr.mxu0 0.0
      %306 = vmatpush1.msra.mxu0 0.0
      %307 = vmatprep.subr.mxu0 0.0
      %308 = vmatpush1.msra.mxu0 0.0
      %309 = vmatprep.subr.mxu0 0.0
      %310 = vmatpush1.msra.mxu0 0.0
      %311 = vmatprep.subr.mxu0 0.0
      %312 = vmatpush1.msra.mxu0 0.0
      %313 = vmatprep.subr.mxu0 0.0
      %314 = vmatpush1.msra.mxu0 0.0
      %315 = vmatprep.subr.mxu0 0.0
      %316 = vmatpush1.msra.mxu0 0.0
      %317 = vmatprep.subr.mxu0 0.0
      %318 = vmatpush1.msra.mxu0 0.0
      %319 = vmatprep.subr.mxu0 0.0
      %320 = vmatpush1.msra.mxu0 0.0
      %321 = vmatprep.subr.mxu0 0.0
      %322 = vmatpush1.msra.mxu0 0.0
      %323 = vmatprep.subr.mxu0 0.0
      %324 = vmatpush1.msra.mxu0 0.0
      %325 = vmatprep.subr.mxu0 0.0
      %326 = vmatpush1.msra.mxu0 0.0
      %327 = vmatprep.subr.mxu0 0.0
      %328 = vmatpush1.msra.mxu0 0.0
      %329 = vmatprep.subr.mxu0 0.0
      %330 = vmatpush1.msra.mxu0 0.0
      %331 = vmatprep.mubr.f32.mxu0 0.0
      %332 = vmatmul.mubr.f32.gmra.mrb[0].mxu0 %v228
      %v333 = vpop.f32.mrb[0].mxu0
      %v334 = vadd.f32 %v265, %v333
      %v335 = vpop.f32.mrb[0].mxu0
      %336 = vmatprep.mubr.f32.mxu0 0.0
      %337 = vmatmul.mubr.f32.gmra.mrb[0].mxu0 %v229
      %v338 = vpop.f32.mrb[0].mxu0
      %v339 = vadd.f32 %v265, %v338
      %v340 = vpop.f32.mrb[0].mxu0
      %341 = vmatprep.mubr.f32.mxu0 0.0
      %342 = vmatmul.mubr.f32.gmra.mrb[0].mxu0 %v230
      %v343 = vpop.f32.mrb[0].mxu0
      %v344 = vadd.f32 %v265, %v343
      %v345 = vpop.f32.mrb[0].mxu0
      %346 = vmatprep.mubr.f32.mxu0 0.0
      %347 = vmatmul.mubr.f32.gmra.mrb[0].mxu0 %v231
      %v348 = vpop.f32.mrb[0].mxu0
      %v349 = vadd.f32 %v265, %v348
      %v350 = vpop.f32.mrb[0].mxu0
      %351 = vmatprep.mubr.f32.mxu0 0.0
      %352 = vmatmul.mubr.f32.gmra.mrb[0].mxu0 %v232
      %v353 = vpop.f32.mrb[0].mxu0
      %v354 = vadd.f32 %v265, %v353
      %v355 = vpop.f32.mrb[0].mxu0
      %356 = vmatprep.mubr.f32.mxu0 0.0
      %357 = vmatmul.mubr.f32.gmra.mrb[0].mxu0 %v233
      %v358 = vpop.f32.mrb[0].mxu0
      %v359 = vadd.f32 %v265, %v358
      %v360 = vpop.f32.mrb[0].mxu0
      %361 = vmatprep.mubr.f32.mxu0 0.0
      %362 = vmatmul.mubr.f32.gmra.mrb[0].mxu0 %v234
      %v363 = vpop.f32.mrb[0].mxu0
      %v364 = vadd.f32 %v265, %v363
      %v365 = vpop.f32.mrb[0].mxu0
      %366 = vmatprep.mubr.f32.mxu0 0.0
      %367 = vmatmul.mubr.f32.gmra.mrb[0].mxu0 %v235
      %v368 = vpop.f32.mrb[0].mxu0
      %v369 = vadd.f32 %v265, %v368
      %v370 = vpop.f32.mrb[0].mxu0
      %371 = vmatprep.mubr.f32.mxu0 0.0
      %372 = vmatmul.mubr.f32.gmra.mrb[0].mxu0 %v236
      %v373 = vpop.f32.mrb[0].mxu0
      %v374 = vadd.f32 %v265, %v373
      %v375 = vpop.f32.mrb[0].mxu0
      %376 = vmatprep.mubr.f32.mxu0 0.0
      %377 = vmatmul.mubr.f32.gmra.mrb[0].mxu0 %v237
      %v378 = vpop.f32.mrb[0].mxu0
      %v379 = vadd.f32 %v265, %v378
      %v380 = vpop.f32.mrb[0].mxu0
      %381 = vmatprep.mubr.f32.mxu0 0.0
      %382 = vmatmul.mubr.f32.gmra.mrb[0].mxu0 %v238
      %v383 = vpop.f32.mrb[0].mxu0
      %v384 = vadd.f32 %v265, %v383
      %v385 = vpop.f32.mrb[0].mxu0
      %386 = vmatprep.mubr.f32.mxu0 0.0
      %387 = vmatmul.mubr.f32.gmra.mrb[0].mxu0 %v239
      %v388 = vpop.f32.mrb[0].mxu0
      %v389 = vadd.f32 %v265, %v388
      %v390 = vpop.f32.mrb[0].mxu0
      %391 = vmatprep.mubr.f32.mxu0 0.0
      %392 = vmatmul.mubr.f32.gmra.mrb[0].mxu0 %v240
      %v393 = vpop.f32.mrb[0].mxu0
      %v394 = vadd.f32 %v265, %v393
      %v395 = vpop.f32.mrb[0].mxu0
      %396 = vmatprep.mubr.f32.mxu0 0.0
      %397 = vmatmul.mubr.f32.gmra.mrb[0].mxu0 %v241
      %v398 = vpop.f32.mrb[0].mxu0
      %v399 = vadd.f32 %v265, %v398
      %v400 = vpop.f32.mrb[0].mxu0
      %401 = vmatprep.mubr.f32.mxu0 0.0
      %402 = vmatmul.mubr.f32.gmra.mrb[0].mxu0 %v242
      %v403 = vpop.f32.mrb[0].mxu0
      %v404 = vadd.f32 %v265, %v403
      %v405 = vpop.f32.mrb[0].mxu0
      %406 = vmatprep.mubr.f32.mxu0 0.0
      %407 = vmatmul.mubr.f32.gmra.mrb[0].mxu0 %v243
      %v408 = vpop.f32.mrb[0].mxu0
      %v409 = vadd.f32 %v265, %v408
      %v410 = vpop.f32.mrb[0].mxu0
      %411 = vdwg.mxu0
      %v412 = vmax.f32 %v334, 0.0
      %v413 = vmax.f32 %v339, 0.0
      %v414 = vmax.f32 %v344, 0.0
      %v415 = vmax.f32 %v349, 0.0
      %v416 = vmax.f32 %v354, 0.0
      %v417 = vmax.f32 %v359, 0.0
      %v418 = vmax.f32 %v364, 0.0
      %v419 = vmax.f32 %v369, 0.0
      %v420 = vmax.f32 %v374, 0.0
      %v421 = vmax.f32 %v379, 0.0
      %v422 = vmax.f32 %v384, 0.0
      %v423 = vmax.f32 %v389, 0.0
      %v424 = vmax.f32 %v394, 0.0
      %v425 = vmax.f32 %v399, 0.0
      %v426 = vmax.f32 %v404, 0.0
      %v427 = vmax.f32 %v409, 0.0
      %v428 = vld [vmem:[%s3] sm:$0xff]
      %v429 = vld [vmem:[%s3 + $0x8] sm:$0xff]
      %v430 = vld [vmem:[%s3 + $0x10] sm:$0xff]
      %v431 = vld [vmem:[%s3 + $0x18] sm:$0xff]
      %v432 = vld [vmem:[%s3 + $0x20] sm:$0xff]
      %v433 = vld [vmem:[%s3 + $0x28] sm:$0xff]
      %v434 = vld [vmem:[%s3 + $0x30] sm:$0xff]
      %v435 = vld [vmem:[%s3 + $0x38] sm:$0xff]
      %v436 = vld [vmem:[%s3 + $0x40] sm:$0xff]
      %v437 = vld [vmem:[%s3 + $0x48] sm:$0xff]
      %v438 = vld [vmem:[%s3 + $0x50] sm:$0xff]
      %v439 = vld [vmem:[%s3 + $0x58] sm:$0xff]
      %v440 = vld [vmem:[%s3 + $0x60] sm:$0xff]
      %v441 = vld [vmem:[%s3 + $0x68] sm:$0xff]
      %v442 = vld [vmem:[%s3 + $0x70] sm:$0xff]
      %v443 = vld [vmem:[%s3 + $0x78] sm:$0xff]
      %v444 = vld [vmem:[%s4] sm:$0x1]
      %v446 = vlaneseq
      %v447 = vshrl.u32 %v446, 7
      %v448 = vsub.s32 0, %v447
      %v449 = vrot.slane %v444, %v448
      %451 = vmatprep.subr.mxu0 0.0
      %452 = vmatpush1.msra.mxu0 %v428
      %453 = vmatprep.subr.mxu0 0.0
      %454 = vmatpush1.msra.mxu0 %v429
      %455 = vmatprep.subr.mxu0 0.0
      %456 = vmatpush1.msra.mxu0 %v430
      %457 = vmatprep.subr.mxu0 0.0
      %458 = vmatpush1.msra.mxu0 %v431
      %459 = vmatprep.subr.mxu0 0.0
      %460 = vmatpush1.msra.mxu0 %v432
      %461 = vmatprep.subr.mxu0 0.0
      %462 = vmatpush1.msra.mxu0 %v433
      %463 = vmatprep.subr.mxu0 0.0
      %464 = vmatpush1.msra.mxu0 %v434
      %465 = vmatprep.subr.mxu0 0.0
      %466 = vmatpush1.msra.mxu0 %v435
      %467 = vmatprep.subr.mxu0 0.0
      %468 = vmatpush1.msra.mxu0 %v436
      %469 = vmatprep.subr.mxu0 0.0
      %470 = vmatpush1.msra.mxu0 %v437
      %471 = vmatprep.subr.mxu0 0.0
      %472 = vmatpush1.msra.mxu0 %v438
      %473 = vmatprep.subr.mxu0 0.0
      %474 = vmatpush1.msra.mxu0 %v439
      %475 = vmatprep.subr.mxu0 0.0
      %476 = vmatpush1.msra.mxu0 %v440
      %477 = vmatprep.subr.mxu0 0.0
      %478 = vmatpush1.msra.mxu0 %v441
      %479 = vmatprep.subr.mxu0 0.0
      %480 = vmatpush1.msra.mxu0 %v442
      %481 = vmatprep.subr.mxu0 0.0
      %482 = vmatpush1.msra.mxu0 %v443
      %483 = vmatprep.subr.mxu0 0.0
      %484 = vmatpush1.msra.mxu0 0.0
      %485 = vmatprep.subr.mxu0 0.0
      %486 = vmatpush1.msra.mxu0 0.0
      %487 = vmatprep.subr.mxu0 0.0
      %488 = vmatpush1.msra.mxu0 0.0
      %489 = vmatprep.subr.mxu0 0.0
      %490 = vmatpush1.msra.mxu0 0.0
      %491 = vmatprep.subr.mxu0 0.0
      %492 = vmatpush1.msra.mxu0 0.0
      %493 = vmatprep.subr.mxu0 0.0
      %494 = vmatpush1.msra.mxu0 0.0
      %495 = vmatprep.subr.mxu0 0.0
      %496 = vmatpush1.msra.mxu0 0.0
      %497 = vmatprep.subr.mxu0 0.0
      %498 = vmatpush1.msra.mxu0 0.0
      %499 = vmatprep.subr.mxu0 0.0
      %500 = vmatpush1.msra.mxu0 0.0
      %501 = vmatprep.subr.mxu0 0.0
      %502 = vmatpush1.msra.mxu0 0.0
      %503 = vmatprep.subr.mxu0 0.0
      %504 = vmatpush1.msra.mxu0 0.0
      %505 = vmatprep.subr.mxu0 0.0
      %506 = vmatpush1.msra.mxu0 0.0
      %507 = vmatprep.subr.mxu0 0.0
      %508 = vmatpush1.msra.mxu0 0.0
      %509 = vmatprep.subr.mxu0 0.0
      %510 = vmatpush1.msra.mxu0 0.0
      %511 = vmatprep.subr.mxu0 0.0
      %512 = vmatpush1.msra.mxu0 0.0
      %513 = vmatprep.subr.mxu0 0.0
      %514 = vmatpush1.msra.mxu0 0.0
      %515 = vmatprep.mubr.f32.mxu0 0.0
      %516 = vmatmul.mubr.f32.gmra.mrb[0].mxu0 %v412
      %v517 = vpop.f32.mrb[0].mxu0
      %v518 = vadd.f32 %v449, %v517
      %v519 = vpop.f32.mrb[0].mxu0
      %520 = vmatprep.mubr.f32.mxu0 0.0
      %521 = vmatmul.mubr.f32.gmra.mrb[0].mxu0 %v413
      %v522 = vpop.f32.mrb[0].mxu0
      %v523 = vadd.f32 %v449, %v522
      %v524 = vpop.f32.mrb[0].mxu0
      %525 = vmatprep.mubr.f32.mxu0 0.0
      %526 = vmatmul.mubr.f32.gmra.mrb[0].mxu0 %v414
      %v527 = vpop.f32.mrb[0].mxu0
      %v528 = vadd.f32 %v449, %v527
      %v529 = vpop.f32.mrb[0].mxu0
      %530 = vmatprep.mubr.f32.mxu0 0.0
      %531 = vmatmul.mubr.f32.gmra.mrb[0].mxu0 %v415
      %v532 = vpop.f32.mrb[0].mxu0
      %v533 = vadd.f32 %v449, %v532
      %v534 = vpop.f32.mrb[0].mxu0
      %535 = vmatprep.mubr.f32.mxu0 0.0
      %536 = vmatmul.mubr.f32.gmra.mrb[0].mxu0 %v416
      %v537 = vpop.f32.mrb[0].mxu0
      %v538 = vadd.f32 %v449, %v537
      %v539 = vpop.f32.mrb[0].mxu0
      %540 = vmatprep.mubr.f32.mxu0 0.0
      %541 = vmatmul.mubr.f32.gmra.mrb[0].mxu0 %v417
      %v542 = vpop.f32.mrb[0].mxu0
      %v543 = vadd.f32 %v449, %v542
      %v544 = vpop.f32.mrb[0].mxu0
      %545 = vmatprep.mubr.f32.mxu0 0.0
      %546 = vmatmul.mubr.f32.gmra.mrb[0].mxu0 %v418
      %v547 = vpop.f32.mrb[0].mxu0
      %v548 = vadd.f32 %v449, %v547
      %v549 = vpop.f32.mrb[0].mxu0
      %550 = vmatprep.mubr.f32.mxu0 0.0
      %551 = vmatmul.mubr.f32.gmra.mrb[0].mxu0 %v419
      %v552 = vpop.f32.mrb[0].mxu0
      %v553 = vadd.f32 %v449, %v552
      %v554 = vpop.f32.mrb[0].mxu0
      %555 = vmatprep.mubr.f32.mxu0 0.0
      %556 = vmatmul.mubr.f32.gmra.mrb[0].mxu0 %v420
      %v557 = vpop.f32.mrb[0].mxu0
      %v558 = vadd.f32 %v449, %v557
      %v559 = vpop.f32.mrb[0].mxu0
      %560 = vmatprep.mubr.f32.mxu0 0.0
      %561 = vmatmul.mubr.f32.gmra.mrb[0].mxu0 %v421
      %v562 = vpop.f32.mrb[0].mxu0
      %v563 = vadd.f32 %v449, %v562
      %v564 = vpop.f32.mrb[0].mxu0
      %565 = vmatprep.mubr.f32.mxu0 0.0
      %566 = vmatmul.mubr.f32.gmra.mrb[0].mxu0 %v422
      %v567 = vpop.f32.mrb[0].mxu0
      %v568 = vadd.f32 %v449, %v567
      %v569 = vpop.f32.mrb[0].mxu0
      %570 = vmatprep.mubr.f32.mxu0 0.0
      %571 = vmatmul.mubr.f32.gmra.mrb[0].mxu0 %v423
      %v572 = vpop.f32.mrb[0].mxu0
      %v573 = vadd.f32 %v449, %v572
      %v574 = vpop.f32.mrb[0].mxu0
      %575 = vmatprep.mubr.f32.mxu0 0.0
      %576 = vmatmul.mubr.f32.gmra.mrb[0].mxu0 %v424
      %v577 = vpop.f32.mrb[0].mxu0
      %v578 = vadd.f32 %v449, %v577
      %v579 = vpop.f32.mrb[0].mxu0
      %580 = vmatprep.mubr.f32.mxu0 0.0
      %581 = vmatmul.mubr.f32.gmra.mrb[0].mxu0 %v425
      %v582 = vpop.f32.mrb[0].mxu0
      %v583 = vadd.f32 %v449, %v582
      %v584 = vpop.f32.mrb[0].mxu0
      %585 = vmatprep.mubr.f32.mxu0 0.0
      %586 = vmatmul.mubr.f32.gmra.mrb[0].mxu0 %v426
      %v587 = vpop.f32.mrb[0].mxu0
      %v588 = vadd.f32 %v449, %v587
      %v589 = vpop.f32.mrb[0].mxu0
      %590 = vmatprep.mubr.f32.mxu0 0.0
      %591 = vmatmul.mubr.f32.gmra.mrb[0].mxu0 %v427
      %v592 = vpop.f32.mrb[0].mxu0
      %v593 = vadd.f32 %v449, %v592
      %v594 = vpop.f32.mrb[0].mxu0
      %595 = vdwg.mxu0
      %596 = vmax.xlane.f32.xlu0 %v518
      %v597 = vpop.xlane.xlu0 %596
      %598 = vmax.xlane.f32.xlu0 %v523
      %v599 = vpop.xlane.xlu0 %598
      %600 = vmax.xlane.f32.xlu0 %v528
      %v601 = vpop.xlane.xlu0 %600
      %602 = vmax.xlane.f32.xlu0 %v533
      %v603 = vpop.xlane.xlu0 %602
      %604 = vmax.xlane.f32.xlu0 %v538
      %v605 = vpop.xlane.xlu0 %604
      %606 = vmax.xlane.f32.xlu0 %v543
      %v607 = vpop.xlane.xlu0 %606
      %608 = vmax.xlane.f32.xlu0 %v548
      %v609 = vpop.xlane.xlu0 %608
      %610 = vmax.xlane.f32.xlu0 %v553
      %v611 = vpop.xlane.xlu0 %610
      %612 = vmax.xlane.f32.xlu0 %v558
      %v613 = vpop.xlane.xlu0 %612
      %614 = vmax.xlane.f32.xlu0 %v563
      %v615 = vpop.xlane.xlu0 %614
      %616 = vmax.xlane.f32.xlu0 %v568
      %v617 = vpop.xlane.xlu0 %616
      %618 = vmax.xlane.f32.xlu0 %v573
      %v619 = vpop.xlane.xlu0 %618
      %620 = vmax.xlane.f32.xlu0 %v578
      %v621 = vpop.xlane.xlu0 %620
      %622 = vmax.xlane.f32.xlu0 %v583
      %v623 = vpop.xlane.xlu0 %622
      %624 = vmax.xlane.f32.xlu0 %v588
      %v625 = vpop.xlane.xlu0 %624
      %626 = vmax.xlane.f32.xlu0 %v593
      %v627 = vpop.xlane.xlu0 %626
      %v628 = vsub.f32 %v518, %v597
      %v629 = vsub.f32 %v523, %v599
      %v630 = vsub.f32 %v528, %v601
      %v631 = vsub.f32 %v533, %v603
      %v632 = vsub.f32 %v538, %v605
      %v633 = vsub.f32 %v543, %v607
      %v634 = vsub.f32 %v548, %v609
      %v635 = vsub.f32 %v553, %v611
      %v636 = vsub.f32 %v558, %v613
      %v637 = vsub.f32 %v563, %v615
      %v638 = vsub.f32 %v568, %v617
      %v639 = vsub.f32 %v573, %v619
      %v640 = vsub.f32 %v578, %v621
      %v641 = vsub.f32 %v583, %v623
      %v642 = vsub.f32 %v588, %v625
      %v643 = vsub.f32 %v593, %v627
      %v644 = vmul.f32 %v628, 1.442695
      %v645 = vpow.pop %v644
      %v646 = vmul.f32 %v629, 1.442695
      %v647 = vpow.pop %v646
      %v648 = vmul.f32 %v630, 1.442695
      %v649 = vpow.pop %v648
      %v650 = vmul.f32 %v631, 1.442695
      %v651 = vpow.pop %v650
      %v652 = vmul.f32 %v632, 1.442695
      %v653 = vpow.pop %v652
      %v654 = vmul.f32 %v633, 1.442695
      %v655 = vpow.pop %v654
      %v656 = vmul.f32 %v634, 1.442695
      %v657 = vpow.pop %v656
      %v658 = vmul.f32 %v635, 1.442695
      %v659 = vpow.pop %v658
      %v660 = vmul.f32 %v636, 1.442695
      %v661 = vpow.pop %v660
      %v662 = vmul.f32 %v637, 1.442695
      %v663 = vpow.pop %v662
      %v664 = vmul.f32 %v638, 1.442695
      %v665 = vpow.pop %v664
      %v666 = vmul.f32 %v639, 1.442695
      %v667 = vpow.pop %v666
      %v668 = vmul.f32 %v640, 1.442695
      %v669 = vpow.pop %v668
      %v670 = vmul.f32 %v641, 1.442695
      %v671 = vpow.pop %v670
      %v672 = vmul.f32 %v642, 1.442695
      %v673 = vpow.pop %v672
      %v674 = vmul.f32 %v643, 1.442695
      %v675 = vpow.pop %v674
      %676 = vadd.xlane.f32.xlu0 %v645
      %v677 = vpop.xlane.xlu0 %676
      %678 = vadd.xlane.f32.xlu0 %v647
      %v679 = vpop.xlane.xlu0 %678
      %680 = vadd.xlane.f32.xlu0 %v649
      %v681 = vpop.xlane.xlu0 %680
      %682 = vadd.xlane.f32.xlu0 %v651
      %v683 = vpop.xlane.xlu0 %682
      %684 = vadd.xlane.f32.xlu0 %v653
      %v685 = vpop.xlane.xlu0 %684
      %686 = vadd.xlane.f32.xlu0 %v655
      %v687 = vpop.xlane.xlu0 %686
      %688 = vadd.xlane.f32.xlu0 %v657
      %v689 = vpop.xlane.xlu0 %688
      %690 = vadd.xlane.f32.xlu0 %v659
      %v691 = vpop.xlane.xlu0 %690
      %692 = vadd.xlane.f32.xlu0 %v661
      %v693 = vpop.xlane.xlu0 %692
      %694 = vadd.xlane.f32.xlu0 %v663
      %v695 = vpop.xlane.xlu0 %694
      %696 = vadd.xlane.f32.xlu0 %v665
      %v697 = vpop.xlane.xlu0 %696
      %698 = vadd.xlane.f32.xlu0 %v667
      %v699 = vpop.xlane.xlu0 %698
      %700 = vadd.xlane.f32.xlu0 %v669
      %v701 = vpop.xlane.xlu0 %700
      %702 = vadd.xlane.f32.xlu0 %v671
      %v703 = vpop.xlane.xlu0 %702
      %704 = vadd.xlane.f32.xlu0 %v673
      %v705 = vpop.xlane.xlu0 %704
      %706 = vadd.xlane.f32.xlu0 %v675
      %v707 = vpop.xlane.xlu0 %706
      %v708 = vlog2.pop %v677
      %v709 = vmul.f32 %v708, 0.6931472
      %v710 = vlog2.pop %v679
      %v711 = vmul.f32 %v710, 0.6931472
      %v712 = vlog2.pop %v681
      %v713 = vmul.f32 %v712, 0.6931472
      %v714 = vlog2.pop %v683
      %v715 = vmul.f32 %v714, 0.6931472
      %v716 = vlog2.pop %v685
      %v717 = vmul.f32 %v716, 0.6931472
      %v718 = vlog2.pop %v687
      %v719 = vmul.f32 %v718, 0.6931472
      %v720 = vlog2.pop %v689
      %v721 = vmul.f32 %v720, 0.6931472
      %v722 = vlog2.pop %v691
      %v723 = vmul.f32 %v722, 0.6931472
      %v724 = vlog2.pop %v693
      %v725 = vmul.f32 %v724, 0.6931472
      %v726 = vlog2.pop %v695
      %v727 = vmul.f32 %v726, 0.6931472
      %v728 = vlog2.pop %v697
      %v729 = vmul.f32 %v728, 0.6931472
      %v730 = vlog2.pop %v699
      %v731 = vmul.f32 %v730, 0.6931472
      %v732 = vlog2.pop %v701
      %v733 = vmul.f32 %v732, 0.6931472
      %v734 = vlog2.pop %v703
      %v735 = vmul.f32 %v734, 0.6931472
      %v736 = vlog2.pop %v705
      %v737 = vmul.f32 %v736, 0.6931472
      %v738 = vlog2.pop %v707
      %v739 = vmul.f32 %v738, 0.6931472
      %v740 = vadd.f32 %v597, %v709
      %v741 = vadd.f32 %v599, %v711
      %v742 = vadd.f32 %v601, %v713
      %v743 = vadd.f32 %v603, %v715
      %v744 = vadd.f32 %v605, %v717
      %v745 = vadd.f32 %v607, %v719
      %v746 = vadd.f32 %v609, %v721
      %v747 = vadd.f32 %v611, %v723
      %v748 = vadd.f32 %v613, %v725
      %v749 = vadd.f32 %v615, %v727
      %v750 = vadd.f32 %v617, %v729
      %v751 = vadd.f32 %v619, %v731
      %v752 = vadd.f32 %v621, %v733
      %v753 = vadd.f32 %v623, %v735
      %v754 = vadd.f32 %v625, %v737
      %v755 = vadd.f32 %v627, %v739
      %v756 = vsub.f32 %v518, %v740
      %v757 = vsub.f32 %v523, %v741
      %v758 = vsub.f32 %v528, %v742
      %v759 = vsub.f32 %v533, %v743
      %v760 = vsub.f32 %v538, %v744
      %v761 = vsub.f32 %v543, %v745
      %v762 = vsub.f32 %v548, %v746
      %v763 = vsub.f32 %v553, %v747
      %v764 = vsub.f32 %v558, %v748
      %v765 = vsub.f32 %v563, %v749
      %v766 = vsub.f32 %v568, %v750
      %v767 = vsub.f32 %v573, %v751
      %v768 = vsub.f32 %v578, %v752
      %v769 = vsub.f32 %v583, %v753
      %v770 = vsub.f32 %v588, %v754
      %v771 = vsub.f32 %v593, %v755
      %772 = vst [vmem:[%s226] sm:$0xff] %v756
      %773 = vst [vmem:[%s226 + $0x8] sm:$0xff] %v757
      %774 = vst [vmem:[%s226 + $0x10] sm:$0xff] %v758
      %775 = vst [vmem:[%s226 + $0x18] sm:$0xff] %v759
      %776 = vst [vmem:[%s226 + $0x20] sm:$0xff] %v760
      %777 = vst [vmem:[%s226 + $0x28] sm:$0xff] %v761
      %778 = vst [vmem:[%s226 + $0x30] sm:$0xff] %v762
      %779 = vst [vmem:[%s226 + $0x38] sm:$0xff] %v763
      %780 = vst [vmem:[%s226 + $0x40] sm:$0xff] %v764
      %781 = vst [vmem:[%s226 + $0x48] sm:$0xff] %v765
      %782 = vst [vmem:[%s226 + $0x50] sm:$0xff] %v766
      %783 = vst [vmem:[%s226 + $0x58] sm:$0xff] %v767
      %784 = vst [vmem:[%s226 + $0x60] sm:$0xff] %v768
      %785 = vst [vmem:[%s226 + $0x68] sm:$0xff] %v769
      %786 = vst [vmem:[%s226 + $0x70] sm:$0xff] %v770
      %787 = vst [vmem:[%s226 + $0x78] sm:$0xff] %v771
      %s788 = smul.u32 16, %s16
      %p789 = scmp.lt.s32.totalorder %s788, 31
      %s790 = scalar_select %p789, %s788, 31
      %s791 = smul.addr %s790, 8
      %s792 = scalar_lea.vmem %s5, %s791
      // Predicated region
      $region41: #{_ann_forward_impl.1} parent=39 // pred_check
        %p793 = pneg %p144
      $region42: #{_ann_forward_impl.1} parent=39 // pred_check_branch
        %795 = sbr.rel (%p793) target = $region44
      $region43: #{_ann_forward_impl.1} parent=39 // pred_region
        %s796 = smul.u32 16, %s16
      $region44: #{_ann_forward_impl.1} parent=39 // pred_fallthru
        _
    $region40: #{_ann_forward_impl.1} parent=5 // pred_fallthru
      _
    %p797 = scmp.le.s32.totalorder 2, %s11
    // Predicated region
    $region45: #{_ann_forward_impl.1} parent=5 // pred_check
      %p798 = pneg %p797
    $region46: #{_ann_forward_impl.1} parent=5 // pred_check_branch
      %800 = sbr.rel (%p798) target = $region48
    $region47: #{_ann_forward_impl.1} parent=5 // pred_region
      %s801 = ssub.s32 %s11, 2
      // Predicated region
      $region49: #{_ann_forward_impl.1} parent=47 // pred_check
        %p802 = pneg %p150
      $region50: #{_ann_forward_impl.1} parent=47 // pred_check_branch
        %804 = sbr.rel (%p802) target = $region52
      $region51: #{_ann_forward_impl.1} parent=47 // pred_region
        %s805 = smul.u32 16, %s17
        %p806 = scmp.lt.s32.totalorder %s805, 31
        %s807 = scalar_select %p806, %s805, 31
        %s808 = smul.addr %s807, 8
        %s809 = scalar_lea.vmem %s5, %s808
      $region52: #{_ann_forward_impl.1} parent=47 // pred_fallthru
        _
    $region48: #{_ann_forward_impl.1} parent=5 // pred_fallthru
      _
  $region6: #{_ann_forward_impl.1} parent=0 // loop_footer
    %s15 = sadd.s32 1, %s11
  $region7: #{_ann_forward_impl.1} parent=0 // loop_footer_branch
    %10 = sbr.rel target = $region3
  $region8: #{_ann_forward_impl.1} parent=0 // loop_exit
    _

// kernel: _ann_forward_impl.1
$region0: #{_ann_forward_impl.1}
  #allocation0 [shape = 'u32[]', space=smem, size = 0x4, offset = 0x4, fixed_abs, tag = 'smem constant byte address 0x4 - core index']
  #allocation1 [shape = 'u32[144,128]{1,0:T(1,128)}', space=vmem, size = 0x12000, scoped, tag = 'internal scratch']
  %s0 = inlined_call_operand.vmem [shape: f32[256,128], index: 0, kind: input, shape index: {}]
  %s1 = inlined_call_operand.vmem [shape: f32[128,128], index: 1, kind: input, shape index: {}]
  %s2 = inlined_call_operand.vmem [shape: f32[1,128], index: 2, kind: input, shape index: {}]
  %s3 = inlined_call_operand.vmem [shape: f32[128,128], index: 3, kind: input, shape index: {}]
  %s4 = inlined_call_operand.vmem [shape: f32[1,128], index: 4, kind: input, shape index: {}]
  %s5 = inlined_call_operand.vmem [shape: f32[256,128], index: 5, kind: output, shape index: {}]
  %s6 = sld [smem:[#allocation0]]
  $region53: #{_ann_forward_impl.1} parent=0
    _
  %s8 = ssub.s32 1, %s6
  %s9 = scalar_select 0, %s8, %s6
  loop: start=0, step=1, limit=4
  $region2: #{_ann_forward_impl.1} parent=0 // loop_pre_header
    _
  $region3: #{_ann_forward_impl.1} parent=0 // loop_header
    %s11 = sphi 0, %s15
    %p12 = scmp.ge.s32.totalorder %s11, 4
    %s21 = sphi 0, %s23
    %s24 = sphi 0, %s21
    %s25 = sphi 0, %s24
    %s41 = sphi 0, %s25
    %s45 = sphi 0, %s45
    %s47 = sphi 0, %s45
    %s48 = sphi 0, %s47
    %s62 = sphi 0, %s48
    %s66 = sphi 0, %s66
    %s68 = sphi 0, %s66
    %s69 = sphi 0, %s68
    %s83 = sphi 0, %s69
    %s87 = sphi 0, %s87
    %s89 = sphi 0, %s87
    %s90 = sphi 0, %s89
    %s104 = sphi 0, %s90
    %s108 = sphi 0, %s108
    %s110 = sphi 0, %s108
    %s111 = sphi 0, %s110
    %s125 = sphi 0, %s111
    %s131 = sphi 0, %s133
    %s134 = sphi 0, %s131
    %s135 = sphi 0, %s134
    %s151 = sphi 0, %s135
  $region4: #{_ann_forward_impl.1} parent=0 // loop_header_branch
    %14 = sbr.rel (%p12) target = $region8
  $region5: #{_ann_forward_impl.1} parent=0 // loop_body
    %s16 = ssub.s32 %s11, 1
    %s17 = ssub.s32 %s11, 2
    %s18 = sadd.s32 %s11, 1
    %s19 = ssub.s32 %s11, %s18
    %p20 = scmp.eq.s32.totalorder %s19, 0
    %s22 = sadd.s32 %s21, 1
    %s23 = scalar_select %p20, %s21, %s22
    %p26 = pneg %p20
    %p27 = scmp.eq.s32.totalorder %s11, 1
    %p28 = por %p26, %p27
    %p29 = scmp.ne.s32.totalorder %s21, %s24
    %p30 = scmp.eq.s32.totalorder %s11, 0
    %p31 = por %p29, %p30
    %p32 = scmp.ne.s32.totalorder %s21, %s24
    %p33 = scmp.eq.s32.totalorder %s16, 1
    %p34 = por %p32, %p33
    %p35 = scmp.ne.s32.totalorder %s24, %s25
    %p36 = scmp.eq.s32.totalorder %s16, 0
    %p37 = por %p35, %p36
    %p38 = scmp.ne.s32.totalorder %s24, %s25
    %p39 = scmp.eq.s32.totalorder %s17, 1
    %p40 = por %p38, %p39
    %p42 = scmp.ne.s32.totalorder %s25, %s41
    %p43 = scmp.eq.s32.totalorder %s17, 0
    %p44 = por %p42, %p43
    %s46 = sadd.s32 %s45, 1
    %p49 = scmp.eq.s32.totalorder %s11, 1
    %p50 = scmp.ne.s32.totalorder %s45, %s47
    %p51 = scmp.eq.s32.totalorder %s11, 0
    %p52 = por %p50, %p51
    %p53 = scmp.ne.s32.totalorder %s45, %s47
    %p54 = scmp.eq.s32.totalorder %s16, 1
    %p55 = por %p53, %p54
    %p56 = scmp.ne.s32.totalorder %s47, %s48
    %p57 = scmp.eq.s32.totalorder %s16, 0
    %p58 = por %p56, %p57
    %p59 = scmp.ne.s32.totalorder %s47, %s48
    %p60 = scmp.eq.s32.totalorder %s17, 1
    %p61 = por %p59, %p60
    %p63 = scmp.ne.s32.totalorder %s48, %s62
    %p64 = scmp.eq.s32.totalorder %s17, 0
    %p65 = por %p63, %p64
    %s67 = sadd.s32 %s66, 1
    %p70 = scmp.eq.s32.totalorder %s11, 1
    %p71 = scmp.ne.s32.totalorder %s66, %s68
    %p72 = scmp.eq.s32.totalorder %s11, 0
    %p73 = por %p71, %p72
    %p74 = scmp.ne.s32.totalorder %s66, %s68
    %p75 = scmp.eq.s32.totalorder %s16, 1
    %p76 = por %p74, %p75
    %p77 = scmp.ne.s32.totalorder %s68, %s69
    %p78 = scmp.eq.s32.totalorder %s16, 0
    %p79 = por %p77, %p78
    %p80 = scmp.ne.s32.totalorder %s68, %s69
    %p81 = scmp.eq.s32.totalorder %s17, 1
    %p82 = por %p80, %p81
    %p84 = scmp.ne.s32.totalorder %s69, %s83
    %p85 = scmp.eq.s32.totalorder %s17, 0
    %p86 = por %p84, %p85
    %s88 = sadd.s32 %s87, 1
    %p91 = scmp.eq.s32.totalorder %s11, 1
    %p92 = scmp.ne.s32.totalorder %s87, %s89
    %p93 = scmp.eq.s32.totalorder %s11, 0
    %p94 = por %p92, %p93
    %p95 = scmp.ne.s32.totalorder %s87, %s89
    %p96 = scmp.eq.s32.totalorder %s16, 1
    %p97 = por %p95, %p96
    %p98 = scmp.ne.s32.totalorder %s89, %s90
    %p99 = scmp.eq.s32.totalorder %s16, 0
    %p100 = por %p98, %p99
    %p101 = scmp.ne.s32.totalorder %s89, %s90
    %p102 = scmp.eq.s32.totalorder %s17, 1
    %p103 = por %p101, %p102
    %p105 = scmp.ne.s32.totalorder %s90, %s104
    %p106 = scmp.eq.s32.totalorder %s17, 0
    %p107 = por %p105, %p106
    %s109 = sadd.s32 %s108, 1
    %p112 = scmp.eq.s32.totalorder %s11, 1
    %p113 = scmp.ne.s32.totalorder %s108, %s110
    %p114 = scmp.eq.s32.totalorder %s11, 0
    %p115 = por %p113, %p114
    %p116 = scmp.ne.s32.totalorder %s108, %s110
    %p117 = scmp.eq.s32.totalorder %s16, 1
    %p118 = por %p116, %p117
    %p119 = scmp.ne.s32.totalorder %s110, %s111
    %p120 = scmp.eq.s32.totalorder %s16, 0
    %p121 = por %p119, %p120
    %p122 = scmp.ne.s32.totalorder %s110, %s111
    %p123 = scmp.eq.s32.totalorder %s17, 1
    %p124 = por %p122, %p123
    %p126 = scmp.ne.s32.totalorder %s111, %s125
    %p127 = scmp.eq.s32.totalorder %s17, 0
    %p128 = por %p126, %p127
    %s129 = ssub.s32 %s11, %s18
    %p130 = scmp.eq.s32.totalorder %s129, 0
    %s132 = sadd.s32 %s131, 1
    %s133 = scalar_select %p130, %s131, %s132
    %p136 = pneg %p130
    %p137 = scmp.eq.s32.totalorder %s11, 1
    %p138 = por %p136, %p137
    %p139 = scmp.ne.s32.totalorder %s131, %s134
    %p140 = scmp.eq.s32.totalorder %s11, 0
    %p141 = por %p139, %p140
    %p142 = scmp.ne.s32.totalorder %s131, %s134
    %p143 = scmp.eq.s32.totalorder %s16, 1
    %p144 = por %p142, %p143
    %p145 = scmp.ne.s32.totalorder %s134, %s135
    %p146 = scmp.eq.s32.totalorder %s16, 0
    %p147 = por %p145, %p146
    %p148 = scmp.ne.s32.totalorder %s134, %s135
    %p149 = scmp.eq.s32.totalorder %s17, 1
    %p150 = por %p148, %p149
    %p152 = scmp.ne.s32.totalorder %s135, %s151
    %p153 = scmp.eq.s32.totalorder %s17, 0
    %p154 = por %p152, %p153
    %p155 = scmp.le.s32.totalorder 1, %s11
    %p156 = scmp.lt.s32.totalorder %s11, 3
    %p157 = pnand %p155, %p156
    %p158 = pneg %p157
    // Predicated region
    $region9: #{_ann_forward_impl.1} parent=5 // pred_check
      _
    $region10: #{_ann_forward_impl.1} parent=5 // pred_check_branch
      %160 = sbr.rel (%p157) target = $region12
    $region11: #{_ann_forward_impl.1} parent=5 // pred_region
      %s161 = ssub.s32 %s11, 1
      // Predicated region
      $region13: #{_ann_forward_impl.1} parent=11 // pred_check
        %p162 = pneg %p58
      $region14: #{_ann_forward_impl.1} parent=11 // pred_check_branch
        %164 = sbr.rel (%p162) target = $region16
      $region15: #{_ann_forward_impl.1} parent=11 // pred_region
        _
      $region16: #{_ann_forward_impl.1} parent=11 // pred_fallthru
        _
      // Predicated region
      $region17: #{_ann_forward_impl.1} parent=11 // pred_check
        %p165 = pneg %p79
      $region18: #{_ann_forward_impl.1} parent=11 // pred_check_branch
        %167 = sbr.rel (%p165) target = $region20
      $region19: #{_ann_forward_impl.1} parent=11 // pred_region
        _
      $region20: #{_ann_forward_impl.1} parent=11 // pred_fallthru
        _
      // Predicated region
      $region21: #{_ann_forward_impl.1} parent=11 // pred_check
        %p168 = pneg %p100
      $region22: #{_ann_forward_impl.1} parent=11 // pred_check_branch
        %170 = sbr.rel (%p168) target = $region24
      $region23: #{_ann_forward_impl.1} parent=11 // pred_region
        _
      $region24: #{_ann_forward_impl.1} parent=11 // pred_fallthru
        _
      // Predicated region
      $region25: #{_ann_forward_impl.1} parent=11 // pred_check
        %p171 = pneg %p121
      $region26: #{_ann_forward_impl.1} parent=11 // pred_check_branch
        %173 = sbr.rel (%p171) target = $region28
      $region27: #{_ann_forward_impl.1} parent=11 // pred_region
        _
      $region28: #{_ann_forward_impl.1} parent=11 // pred_fallthru
        _
    $region12: #{_ann_forward_impl.1} parent=5 // pred_fallthru
      _
    %p174 = scmp.lt.s32.totalorder %s11, 2
    // Predicated region
    $region29: #{_ann_forward_impl.1} parent=5 // pred_check
      %p175 = pneg %p174
    $region30: #{_ann_forward_impl.1} parent=5 // pred_check_branch
      %177 = sbr.rel (%p175) target = $region32
    $region31: #{_ann_forward_impl.1} parent=5 // pred_region
      // Predicated region
      $region33: #{_ann_forward_impl.1} parent=31 // pred_check
        %p178 = pneg %p31
      $region34: #{_ann_forward_impl.1} parent=31 // pred_check_branch
        %180 = sbr.rel (%p178) target = $region36
      $region35: #{_ann_forward_impl.1} parent=31 // pred_region
        %s181 = smul.u32 16, %s11
        %p182 = scmp.lt.s32.totalorder %s181, 31
        %s183 = scalar_select %p182, %s181, 31
        %s184 = smul.addr %s183, 8
        %s185 = scalar_lea.vmem %s0, %s184
        %s186 = smul.u32 16, %s11
      $region36: #{_ann_forward_impl.1} parent=31 // pred_fallthru
        _
    $region32: #{_ann_forward_impl.1} parent=5 // pred_fallthru
      _
    %p187 = scmp.le.s32.totalorder 1, %s11
    %p188 = scmp.lt.s32.totalorder %s11, 3
    %p189 = pnand %p187, %p188
    %p190 = pneg %p189
    // Predicated region
    $region37: #{_ann_forward_impl.1} parent=5 // pred_check
      _
    $region38: #{_ann_forward_impl.1} parent=5 // pred_check_branch
      %192 = sbr.rel (%p189) target = $region40
    $region39: #{_ann_forward_impl.1} parent=5 // pred_region
      %s193 = ssub.s32 %s11, 1
      %s194 = smul.u32 16, %s16
      %p195 = scmp.lt.s32.totalorder %s194, 31
      %s196 = scalar_select %p195, %s194, 31
      %s197 = smul.addr %s196, 8
      %s198 = scalar_lea.vmem %s0, %s197
      %p199 = pneg %p37
      %p200 = pneg %p34
      %p201 = pneg %p58
      %p202 = pneg %p55
      %p203 = pneg %p79
      %p204 = pneg %p76
      %p205 = pneg %p100
      %p206 = pneg %p97
      %p207 = pneg %p121
      %p208 = pneg %p118
      %p209 = pneg %p147
      %p210 = pneg %p144
      %s211 = smul.u32 16, %s16
      %p212 = scmp.lt.s32.totalorder %s211, 31
      %s213 = scalar_select %p212, %s211, 31
      %s214 = smul.addr %s213, 8
      %s215 = scalar_lea.vmem %s5, %s214
      %s216 = smul.u32 16, %s16
      %p217 = scmp.lt.s32.totalorder %s216, 31
      %s218 = scalar_select %p217, %s216, 31
      %s219 = smul.addr %s218, 8
      %s220 = scalar_lea.vmem %s0, %s219
      %s221 = smul.u32 16, %s16
      %s222 = smul.u32 16, %s16
      %p223 = scmp.lt.s32.totalorder %s222, 31
      %s224 = scalar_select %p223, %s222, 31
      %s225 = smul.addr %s224, 8
      %s226 = scalar_lea.vmem %s5, %s225
      %s227 = smul.u32 16, %s16
      %v228 = vld [vmem:[%s220] sm:$0xff]
      %v229 = vld [vmem:[%s220 + $0x8] sm:$0xff]
      %v230 = vld [vmem:[%s220 + $0x10] sm:$0xff]
      %v231 = vld [vmem:[%s220 + $0x18] sm:$0xff]
      %v232 = vld [vmem:[%s220 + $0x20] sm:$0xff]
      %v233 = vld [vmem:[%s220 + $0x28] sm:$0xff]
      %v234 = vld [vmem:[%s220 + $0x30] sm:$0xff]
      %v235 = vld [vmem:[%s220 + $0x38] sm:$0xff]
      %v236 = vld [vmem:[%s220 + $0x40] sm:$0xff]
      %v237 = vld [vmem:[%s220 + $0x48] sm:$0xff]
      %v238 = vld [vmem:[%s220 + $0x50] sm:$0xff]
      %v239 = vld [vmem:[%s220 + $0x58] sm:$0xff]
      %v240 = vld [vmem:[%s220 + $0x60] sm:$0xff]
      %v241 = vld [vmem:[%s220 + $0x68] sm:$0xff]
      %v242 = vld [vmem:[%s220 + $0x70] sm:$0xff]
      %v243 = vld [vmem:[%s220 + $0x78] sm:$0xff]
      %v244 = vld [vmem:[%s1] sm:$0xff]
      %v245 = vld [vmem:[%s1 + $0x8] sm:$0xff]
      %v246 = vld [vmem:[%s1 + $0x10] sm:$0xff]
      %v247 = vld [vmem:[%s1 + $0x18] sm:$0xff]
      %v248 = vld [vmem:[%s1 + $0x20] sm:$0xff]
      %v249 = vld [vmem:[%s1 + $0x28] sm:$0xff]
      %v250 = vld [vmem:[%s1 + $0x30] sm:$0xff]
      %v251 = vld [vmem:[%s1 + $0x38] sm:$0xff]
      %v252 = vld [vmem:[%s1 + $0x40] sm:$0xff]
      %v253 = vld [vmem:[%s1 + $0x48] sm:$0xff]
      %v254 = vld [vmem:[%s1 + $0x50] sm:$0xff]
      %v255 = vld [vmem:[%s1 + $0x58] sm:$0xff]
      %v256 = vld [vmem:[%s1 + $0x60] sm:$0xff]
      %v257 = vld [vmem:[%s1 + $0x68] sm:$0xff]
      %v258 = vld [vmem:[%s1 + $0x70] sm:$0xff]
      %v259 = vld [vmem:[%s1 + $0x78] sm:$0xff]
      %v260 = vld [vmem:[%s2] sm:$0x1]
      %v262 = vlaneseq
      %v263 = vshrl.u32 %v262, 7
      %v264 = vsub.s32 0, %v263
      %v265 = vrot.slane %v260, %v264
      %267 = vmatprep.subr.mxu0 0.0
      %268 = vmatpush1.msra.mxu0 %v244
      %269 = vmatprep.subr.mxu0 0.0
      %270 = vmatpush1.msra.mxu0 %v245
      %271 = vmatprep.subr.mxu0 0.0
      %272 = vmatpush1.msra.mxu0 %v246
      %273 = vmatprep.subr.mxu0 0.0
      %274 = vmatpush1.msra.mxu0 %v247
      %275 = vmatprep.subr.mxu0 0.0
      %276 = vmatpush1.msra.mxu0 %v248
      %277 = vmatprep.subr.mxu0 0.0
      %278 = vmatpush1.msra.mxu0 %v249
      %279 = vmatprep.subr.mxu0 0.0
      %280 = vmatpush1.msra.mxu0 %v250
      %281 = vmatprep.subr.mxu0 0.0
      %282 = vmatpush1.msra.mxu0 %v251
      %283 = vmatprep.subr.mxu0 0.0
      %284 = vmatpush1.msra.mxu0 %v252
      %285 = vmatprep.subr.mxu0 0.0
      %286 = vmatpush1.msra.mxu0 %v253
      %287 = vmatprep.subr.mxu0 0.0
      %288 = vmatpush1.msra.mxu0 %v254
      %289 = vmatprep.subr.mxu0 0.0
      %290 = vmatpush1.msra.mxu0 %v255
      %291 = vmatprep.subr.mxu0 0.0
      %292 = vmatpush1.msra.mxu0 %v256
      %293 = vmatprep.subr.mxu0 0.0
      %294 = vmatpush1.msra.mxu0 %v257
      %295 = vmatprep.subr.mxu0 0.0
      %296 = vmatpush1.msra.mxu0 %v258
      %297 = vmatprep.subr.mxu0 0.0
      %298 = vmatpush1.msra.mxu0 %v259
      %299 = vmatprep.subr.mxu0 0.0
      %300 = vmatpush1.msra.mxu0 0.0
      %301 = vmatprep.subr.mxu0 0.0
      %302 = vmatpush1.msra.mxu0 0.0
      %303 = vmatprep.subr.mxu0 0.0
      %304 = vmatpush1.msra.mxu0 0.0
      %305 = vmatprep.subr.mxu0 0.0
      %306 = vmatpush1.msra.mxu0 0.0
      %307 = vmatprep.subr.mxu0 0.0
      %308 = vmatpush1.msra.mxu0 0.0
      %309 = vmatprep.subr.mxu0 0.0
      %310 = vmatpush1.msra.mxu0 0.0
      %311 = vmatprep.subr.mxu0 0.0
      %312 = vmatpush1.msra.mxu0 0.0
      %313 = vmatprep.subr.mxu0 0.0
      %314 = vmatpush1.msra.mxu0 0.0
      %315 = vmatprep.subr.mxu0 0.0
      %316 = vmatpush1.msra.mxu0 0.0
      %317 = vmatprep.subr.mxu0 0.0
      %318 = vmatpush1.msra.mxu0 0.0
      %319 = vmatprep.subr.mxu0 0.0
      %320 = vmatpush1.msra.mxu0 0.0
      %321 = vmatprep.subr.mxu0 0.0
      %322 = vmatpush1.msra.mxu0 0.0
      %323 = vmatprep.subr.mxu0 0.0
      %324 = vmatpush1.msra.mxu0 0.0
      %325 = vmatprep.subr.mxu0 0.0
      %326 = vmatpush1.msra.mxu0 0.0
      %327 = vmatprep.subr.mxu0 0.0
      %328 = vmatpush1.msra.mxu0 0.0
      %329 = vmatprep.subr.mxu0 0.0
      %330 = vmatpush1.msra.mxu0 0.0
      %331 = vmatprep.mubr.f32.mxu0 0.0
      %332 = vmatmul.mubr.f32.gmra.mrb[0].mxu0 %v228
      %v333 = vpop.f32.mrb[0].mxu0
      %v334 = vadd.f32 %v265, %v333
      %v335 = vpop.f32.mrb[0].mxu0
      %336 = vmatprep.mubr.f32.mxu0 0.0
      %337 = vmatmul.mubr.f32.gmra.mrb[0].mxu0 %v229
      %v338 = vpop.f32.mrb[0].mxu0
      %v339 = vadd.f32 %v265, %v338
      %v340 = vpop.f32.mrb[0].mxu0
      %341 = vmatprep.mubr.f32.mxu0 0.0
      %342 = vmatmul.mubr.f32.gmra.mrb[0].mxu0 %v230
      %v343 = vpop.f32.mrb[0].mxu0
      %v344 = vadd.f32 %v265, %v343
      %v345 = vpop.f32.mrb[0].mxu0
      %346 = vmatprep.mubr.f32.mxu0 0.0
      %347 = vmatmul.mubr.f32.gmra.mrb[0].mxu0 %v231
      %v348 = vpop.f32.mrb[0].mxu0
      %v349 = vadd.f32 %v265, %v348
      %v350 = vpop.f32.mrb[0].mxu0
      %351 = vmatprep.mubr.f32.mxu0 0.0
      %352 = vmatmul.mubr.f32.gmra.mrb[0].mxu0 %v232
      %v353 = vpop.f32.mrb[0].mxu0
      %v354 = vadd.f32 %v265, %v353
      %v355 = vpop.f32.mrb[0].mxu0
      %356 = vmatprep.mubr.f32.mxu0 0.0
      %357 = vmatmul.mubr.f32.gmra.mrb[0].mxu0 %v233
      %v358 = vpop.f32.mrb[0].mxu0
      %v359 = vadd.f32 %v265, %v358
      %v360 = vpop.f32.mrb[0].mxu0
      %361 = vmatprep.mubr.f32.mxu0 0.0
      %362 = vmatmul.mubr.f32.gmra.mrb[0].mxu0 %v234
      %v363 = vpop.f32.mrb[0].mxu0
      %v364 = vadd.f32 %v265, %v363
      %v365 = vpop.f32.mrb[0].mxu0
      %366 = vmatprep.mubr.f32.mxu0 0.0
      %367 = vmatmul.mubr.f32.gmra.mrb[0].mxu0 %v235
      %v368 = vpop.f32.mrb[0].mxu0
      %v369 = vadd.f32 %v265, %v368
      %v370 = vpop.f32.mrb[0].mxu0
      %371 = vmatprep.mubr.f32.mxu0 0.0
      %372 = vmatmul.mubr.f32.gmra.mrb[0].mxu0 %v236
      %v373 = vpop.f32.mrb[0].mxu0
      %v374 = vadd.f32 %v265, %v373
      %v375 = vpop.f32.mrb[0].mxu0
      %376 = vmatprep.mubr.f32.mxu0 0.0
      %377 = vmatmul.mubr.f32.gmra.mrb[0].mxu0 %v237
      %v378 = vpop.f32.mrb[0].mxu0
      %v379 = vadd.f32 %v265, %v378
      %v380 = vpop.f32.mrb[0].mxu0
      %381 = vmatprep.mubr.f32.mxu0 0.0
      %382 = vmatmul.mubr.f32.gmra.mrb[0].mxu0 %v238
      %v383 = vpop.f32.mrb[0].mxu0
      %v384 = vadd.f32 %v265, %v383
      %v385 = vpop.f32.mrb[0].mxu0
      %386 = vmatprep.mubr.f32.mxu0 0.0
      %387 = vmatmul.mubr.f32.gmra.mrb[0].mxu0 %v239
      %v388 = vpop.f32.mrb[0].mxu0
      %v389 = vadd.f32 %v265, %v388
      %v390 = vpop.f32.mrb[0].mxu0
      %391 = vmatprep.mubr.f32.mxu0 0.0
      %392 = vmatmul.mubr.f32.gmra.mrb[0].mxu0 %v240
      %v393 = vpop.f32.mrb[0].mxu0
      %v394 = vadd.f32 %v265, %v393
      %v395 = vpop.f32.mrb[0].mxu0
      %396 = vmatprep.mubr.f32.mxu0 0.0
      %397 = vmatmul.mubr.f32.gmra.mrb[0].mxu0 %v241
      %v398 = vpop.f32.mrb[0].mxu0
      %v399 = vadd.f32 %v265, %v398
      %v400 = vpop.f32.mrb[0].mxu0
      %401 = vmatprep.mubr.f32.mxu0 0.0
      %402 = vmatmul.mubr.f32.gmra.mrb[0].mxu0 %v242
      %v403 = vpop.f32.mrb[0].mxu0
      %v404 = vadd.f32 %v265, %v403
      %v405 = vpop.f32.mrb[0].mxu0
      %406 = vmatprep.mubr.f32.mxu0 0.0
      %407 = vmatmul.mubr.f32.gmra.mrb[0].mxu0 %v243
      %v408 = vpop.f32.mrb[0].mxu0
      %v409 = vadd.f32 %v265, %v408
      %v410 = vpop.f32.mrb[0].mxu0
      %411 = vdwg.mxu0
      %v412 = vmax.f32 %v334, 0.0
      %v413 = vmax.f32 %v339, 0.0
      %v414 = vmax.f32 %v344, 0.0
      %v415 = vmax.f32 %v349, 0.0
      %v416 = vmax.f32 %v354, 0.0
      %v417 = vmax.f32 %v359, 0.0
      %v418 = vmax.f32 %v364, 0.0
      %v419 = vmax.f32 %v369, 0.0
      %v420 = vmax.f32 %v374, 0.0
      %v421 = vmax.f32 %v379, 0.0
      %v422 = vmax.f32 %v384, 0.0
      %v423 = vmax.f32 %v389, 0.0
      %v424 = vmax.f32 %v394, 0.0
      %v425 = vmax.f32 %v399, 0.0
      %v426 = vmax.f32 %v404, 0.0
      %v427 = vmax.f32 %v409, 0.0
      %v428 = vld [vmem:[%s3] sm:$0xff]
      %v429 = vld [vmem:[%s3 + $0x8] sm:$0xff]
      %v430 = vld [vmem:[%s3 + $0x10] sm:$0xff]
      %v431 = vld [vmem:[%s3 + $0x18] sm:$0xff]
      %v432 = vld [vmem:[%s3 + $0x20] sm:$0xff]
      %v433 = vld [vmem:[%s3 + $0x28] sm:$0xff]
      %v434 = vld [vmem:[%s3 + $0x30] sm:$0xff]
      %v435 = vld [vmem:[%s3 + $0x38] sm:$0xff]
      %v436 = vld [vmem:[%s3 + $0x40] sm:$0xff]
      %v437 = vld [vmem:[%s3 + $0x48] sm:$0xff]
      %v438 = vld [vmem:[%s3 + $0x50] sm:$0xff]
      %v439 = vld [vmem:[%s3 + $0x58] sm:$0xff]
      %v440 = vld [vmem:[%s3 + $0x60] sm:$0xff]
      %v441 = vld [vmem:[%s3 + $0x68] sm:$0xff]
      %v442 = vld [vmem:[%s3 + $0x70] sm:$0xff]
      %v443 = vld [vmem:[%s3 + $0x78] sm:$0xff]
      %v444 = vld [vmem:[%s4] sm:$0x1]
      %v446 = vlaneseq
      %v447 = vshrl.u32 %v446, 7
      %v448 = vsub.s32 0, %v447
      %v449 = vrot.slane %v444, %v448
      %451 = vmatprep.subr.mxu0 0.0
      %452 = vmatpush1.msra.mxu0 %v428
      %453 = vmatprep.subr.mxu0 0.0
      %454 = vmatpush1.msra.mxu0 %v429
      %455 = vmatprep.subr.mxu0 0.0
      %456 = vmatpush1.msra.mxu0 %v430
      %457 = vmatprep.subr.mxu0 0.0
      %458 = vmatpush1.msra.mxu0 %v431
      %459 = vmatprep.subr.mxu0 0.0
      %460 = vmatpush1.msra.mxu0 %v432
      %461 = vmatprep.subr.mxu0 0.0
      %462 = vmatpush1.msra.mxu0 %v433
      %463 = vmatprep.subr.mxu0 0.0
      %464 = vmatpush1.msra.mxu0 %v434
      %465 = vmatprep.subr.mxu0 0.0
      %466 = vmatpush1.msra.mxu0 %v435
      %467 = vmatprep.subr.mxu0 0.0
      %468 = vmatpush1.msra.mxu0 %v436
      %469 = vmatprep.subr.mxu0 0.0
      %470 = vmatpush1.msra.mxu0 %v437
      %471 = vmatprep.subr.mxu0 0.0
      %472 = vmatpush1.msra.mxu0 %v438
      %473 = vmatprep.subr.mxu0 0.0
      %474 = vmatpush1.msra.mxu0 %v439
      %475 = vmatprep.subr.mxu0 0.0
      %476 = vmatpush1.msra.mxu0 %v440
      %477 = vmatprep.subr.mxu0 0.0
      %478 = vmatpush1.msra.mxu0 %v441
      %479 = vmatprep.subr.mxu0 0.0
      %480 = vmatpush1.msra.mxu0 %v442
      %481 = vmatprep.subr.mxu0 0.0
      %482 = vmatpush1.msra.mxu0 %v443
      %483 = vmatprep.subr.mxu0 0.0
      %484 = vmatpush1.msra.mxu0 0.0
      %485 = vmatprep.subr.mxu0 0.0
      %486 = vmatpush1.msra.mxu0 0.0
      %487 = vmatprep.subr.mxu0 0.0
      %488 = vmatpush1.msra.mxu0 0.0
      %489 = vmatprep.subr.mxu0 0.0
      %490 = vmatpush1.msra.mxu0 0.0
      %491 = vmatprep.subr.mxu0 0.0
      %492 = vmatpush1.msra.mxu0 0.0
      %493 = vmatprep.subr.mxu0 0.0
      %494 = vmatpush1.msra.mxu0 0.0
      %495 = vmatprep.subr.mxu0 0.0
      %496 = vmatpush1.msra.mxu0 0.0
      %497 = vmatprep.subr.mxu0 0.0
      %498 = vmatpush1.msra.mxu0 0.0
      %499 = vmatprep.subr.mxu0 0.0
      %500 = vmatpush1.msra.mxu0 0.0
      %501 = vmatprep.subr.mxu0 0.0
      %502 = vmatpush1.msra.mxu0 0.0
      %503 = vmatprep.subr.mxu0 0.0
      %504 = vmatpush1.msra.mxu0 0.0
      %505 = vmatprep.subr.mxu0 0.0
      %506 = vmatpush1.msra.mxu0 0.0
      %507 = vmatprep.subr.mxu0 0.0
      %508 = vmatpush1.msra.mxu0 0.0
      %509 = vmatprep.subr.mxu0 0.0
      %510 = vmatpush1.msra.mxu0 0.0
      %511 = vmatprep.subr.mxu0 0.0
      %512 = vmatpush1.msra.mxu0 0.0
      %513 = vmatprep.subr.mxu0 0.0
      %514 = vmatpush1.msra.mxu0 0.0
      %515 = vmatprep.mubr.f32.mxu0 0.0
      %516 = vmatmul.mubr.f32.gmra.mrb[0].mxu0 %v412
      %v517 = vpop.f32.mrb[0].mxu0
      %v518 = vadd.f32 %v449, %v517
      %v519 = vpop.f32.mrb[0].mxu0
      %520 = vmatprep.mubr.f32.mxu0 0.0
      %521 = vmatmul.mubr.f32.gmra.mrb[0].mxu0 %v413
      %v522 = vpop.f32.mrb[0].mxu0
      %v523 = vadd.f32 %v449, %v522
      %v524 = vpop.f32.mrb[0].mxu0
      %525 = vmatprep.mubr.f32.mxu0 0.0
      %526 = vmatmul.mubr.f32.gmra.mrb[0].mxu0 %v414
      %v527 = vpop.f32.mrb[0].mxu0
      %v528 = vadd.f32 %v449, %v527
      %v529 = vpop.f32.mrb[0].mxu0
      %530 = vmatprep.mubr.f32.mxu0 0.0
      %531 = vmatmul.mubr.f32.gmra.mrb[0].mxu0 %v415
      %v532 = vpop.f32.mrb[0].mxu0
      %v533 = vadd.f32 %v449, %v532
      %v534 = vpop.f32.mrb[0].mxu0
      %535 = vmatprep.mubr.f32.mxu0 0.0
      %536 = vmatmul.mubr.f32.gmra.mrb[0].mxu0 %v416
      %v537 = vpop.f32.mrb[0].mxu0
      %v538 = vadd.f32 %v449, %v537
      %v539 = vpop.f32.mrb[0].mxu0
      %540 = vmatprep.mubr.f32.mxu0 0.0
      %541 = vmatmul.mubr.f32.gmra.mrb[0].mxu0 %v417
      %v542 = vpop.f32.mrb[0].mxu0
      %v543 = vadd.f32 %v449, %v542
      %v544 = vpop.f32.mrb[0].mxu0
      %545 = vmatprep.mubr.f32.mxu0 0.0
      %546 = vmatmul.mubr.f32.gmra.mrb[0].mxu0 %v418
      %v547 = vpop.f32.mrb[0].mxu0
      %v548 = vadd.f32 %v449, %v547
      %v549 = vpop.f32.mrb[0].mxu0
      %550 = vmatprep.mubr.f32.mxu0 0.0
      %551 = vmatmul.mubr.f32.gmra.mrb[0].mxu0 %v419
      %v552 = vpop.f32.mrb[0].mxu0
      %v553 = vadd.f32 %v449, %v552
      %v554 = vpop.f32.mrb[0].mxu0
      %555 = vmatprep.mubr.f32.mxu0 0.0
      %556 = vmatmul.mubr.f32.gmra.mrb[0].mxu0 %v420
      %v557 = vpop.f32.mrb[0].mxu0
      %v558 = vadd.f32 %v449, %v557
      %v559 = vpop.f32.mrb[0].mxu0
      %560 = vmatprep.mubr.f32.mxu0 0.0
      %561 = vmatmul.mubr.f32.gmra.mrb[0].mxu0 %v421
      %v562 = vpop.f32.mrb[0].mxu0
      %v563 = vadd.f32 %v449, %v562
      %v564 = vpop.f32.mrb[0].mxu0
      %565 = vmatprep.mubr.f32.mxu0 0.0
      %566 = vmatmul.mubr.f32.gmra.mrb[0].mxu0 %v422
      %v567 = vpop.f32.mrb[0].mxu0
      %v568 = vadd.f32 %v449, %v567
      %v569 = vpop.f32.mrb[0].mxu0
      %570 = vmatprep.mubr.f32.mxu0 0.0
      %571 = vmatmul.mubr.f32.gmra.mrb[0].mxu0 %v423
      %v572 = vpop.f32.mrb[0].mxu0
      %v573 = vadd.f32 %v449, %v572
      %v574 = vpop.f32.mrb[0].mxu0
      %575 = vmatprep.mubr.f32.mxu0 0.0
      %576 = vmatmul.mubr.f32.gmra.mrb[0].mxu0 %v424
      %v577 = vpop.f32.mrb[0].mxu0
      %v578 = vadd.f32 %v449, %v577
      %v579 = vpop.f32.mrb[0].mxu0
      %580 = vmatprep.mubr.f32.mxu0 0.0
      %581 = vmatmul.mubr.f32.gmra.mrb[0].mxu0 %v425
      %v582 = vpop.f32.mrb[0].mxu0
      %v583 = vadd.f32 %v449, %v582
      %v584 = vpop.f32.mrb[0].mxu0
      %585 = vmatprep.mubr.f32.mxu0 0.0
      %586 = vmatmul.mubr.f32.gmra.mrb[0].mxu0 %v426
      %v587 = vpop.f32.mrb[0].mxu0
      %v588 = vadd.f32 %v449, %v587
      %v589 = vpop.f32.mrb[0].mxu0
      %590 = vmatprep.mubr.f32.mxu0 0.0
      %591 = vmatmul.mubr.f32.gmra.mrb[0].mxu0 %v427
      %v592 = vpop.f32.mrb[0].mxu0
      %v593 = vadd.f32 %v449, %v592
      %v594 = vpop.f32.mrb[0].mxu0
      %595 = vdwg.mxu0
      %596 = vmax.xlane.f32.xlu0 %v518
      %v597 = vpop.xlane.xlu0 %596
      %598 = vmax.xlane.f32.xlu0 %v523
      %v599 = vpop.xlane.xlu0 %598
      %600 = vmax.xlane.f32.xlu0 %v528
      %v601 = vpop.xlane.xlu0 %600
      %602 = vmax.xlane.f32.xlu0 %v533
      %v603 = vpop.xlane.xlu0 %602
      %604 = vmax.xlane.f32.xlu0 %v538
      %v605 = vpop.xlane.xlu0 %604
      %606 = vmax.xlane.f32.xlu0 %v543
      %v607 = vpop.xlane.xlu0 %606
      %608 = vmax.xlane.f32.xlu0 %v548
      %v609 = vpop.xlane.xlu0 %608
      %610 = vmax.xlane.f32.xlu0 %v553
      %v611 = vpop.xlane.xlu0 %610
      %612 = vmax.xlane.f32.xlu0 %v558
      %v613 = vpop.xlane.xlu0 %612
      %614 = vmax.xlane.f32.xlu0 %v563
      %v615 = vpop.xlane.xlu0 %614
      %616 = vmax.xlane.f32.xlu0 %v568
      %v617 = vpop.xlane.xlu0 %616
      %618 = vmax.xlane.f32.xlu0 %v573
      %v619 = vpop.xlane.xlu0 %618
      %620 = vmax.xlane.f32.xlu0 %v578
      %v621 = vpop.xlane.xlu0 %620
      %622 = vmax.xlane.f32.xlu0 %v583
      %v623 = vpop.xlane.xlu0 %622
      %624 = vmax.xlane.f32.xlu0 %v588
      %v625 = vpop.xlane.xlu0 %624
      %626 = vmax.xlane.f32.xlu0 %v593
      %v627 = vpop.xlane.xlu0 %626
      %v628 = vsub.f32 %v518, %v597
      %v629 = vsub.f32 %v523, %v599
      %v630 = vsub.f32 %v528, %v601
      %v631 = vsub.f32 %v533, %v603
      %v632 = vsub.f32 %v538, %v605
      %v633 = vsub.f32 %v543, %v607
      %v634 = vsub.f32 %v548, %v609
      %v635 = vsub.f32 %v553, %v611
      %v636 = vsub.f32 %v558, %v613
      %v637 = vsub.f32 %v563, %v615
      %v638 = vsub.f32 %v568, %v617
      %v639 = vsub.f32 %v573, %v619
      %v640 = vsub.f32 %v578, %v621
      %v641 = vsub.f32 %v583, %v623
      %v642 = vsub.f32 %v588, %v625
      %v643 = vsub.f32 %v593, %v627
      %v644 = vmul.f32 %v628, 1.442695
      %v645 = vpow.pop %v644
      %v646 = vmul.f32 %v629, 1.442695
      %v647 = vpow.pop %v646
      %v648 = vmul.f32 %v630, 1.442695
      %v649 = vpow.pop %v648
      %v650 = vmul.f32 %v631, 1.442695
      %v651 = vpow.pop %v650
      %v652 = vmul.f32 %v632, 1.442695
      %v653 = vpow.pop %v652
      %v654 = vmul.f32 %v633, 1.442695
      %v655 = vpow.pop %v654
      %v656 = vmul.f32 %v634, 1.442695
      %v657 = vpow.pop %v656
      %v658 = vmul.f32 %v635, 1.442695
      %v659 = vpow.pop %v658
      %v660 = vmul.f32 %v636, 1.442695
      %v661 = vpow.pop %v660
      %v662 = vmul.f32 %v637, 1.442695
      %v663 = vpow.pop %v662
      %v664 = vmul.f32 %v638, 1.442695
      %v665 = vpow.pop %v664
      %v666 = vmul.f32 %v639, 1.442695
      %v667 = vpow.pop %v666
      %v668 = vmul.f32 %v640, 1.442695
      %v669 = vpow.pop %v668
      %v670 = vmul.f32 %v641, 1.442695
      %v671 = vpow.pop %v670
      %v672 = vmul.f32 %v642, 1.442695
      %v673 = vpow.pop %v672
      %v674 = vmul.f32 %v643, 1.442695
      %v675 = vpow.pop %v674
      %676 = vadd.xlane.f32.xlu0 %v645
      %v677 = vpop.xlane.xlu0 %676
      %678 = vadd.xlane.f32.xlu0 %v647
      %v679 = vpop.xlane.xlu0 %678
      %680 = vadd.xlane.f32.xlu0 %v649
      %v681 = vpop.xlane.xlu0 %680
      %682 = vadd.xlane.f32.xlu0 %v651
      %v683 = vpop.xlane.xlu0 %682
      %684 = vadd.xlane.f32.xlu0 %v653
      %v685 = vpop.xlane.xlu0 %684
      %686 = vadd.xlane.f32.xlu0 %v655
      %v687 = vpop.xlane.xlu0 %686
      %688 = vadd.xlane.f32.xlu0 %v657
      %v689 = vpop.xlane.xlu0 %688
      %690 = vadd.xlane.f32.xlu0 %v659
      %v691 = vpop.xlane.xlu0 %690
      %692 = vadd.xlane.f32.xlu0 %v661
      %v693 = vpop.xlane.xlu0 %692
      %694 = vadd.xlane.f32.xlu0 %v663
      %v695 = vpop.xlane.xlu0 %694
      %696 = vadd.xlane.f32.xlu0 %v665
      %v697 = vpop.xlane.xlu0 %696
      %698 = vadd.xlane.f32.xlu0 %v667
      %v699 = vpop.xlane.xlu0 %698
      %700 = vadd.xlane.f32.xlu0 %v669
      %v701 = vpop.xlane.xlu0 %700
      %702 = vadd.xlane.f32.xlu0 %v671
      %v703 = vpop.xlane.xlu0 %702
      %704 = vadd.xlane.f32.xlu0 %v673
      %v705 = vpop.xlane.xlu0 %704
      %706 = vadd.xlane.f32.xlu0 %v675
      %v707 = vpop.xlane.xlu0 %706
      %v708 = vlog2.pop %v677
      %v709 = vmul.f32 %v708, 0.6931472
      %v710 = vlog2.pop %v679
      %v711 = vmul.f32 %v710, 0.6931472
      %v712 = vlog2.pop %v681
      %v713 = vmul.f32 %v712, 0.6931472
      %v714 = vlog2.pop %v683
      %v715 = vmul.f32 %v714, 0.6931472
      %v716 = vlog2.pop %v685
      %v717 = vmul.f32 %v716, 0.6931472
      %v718 = vlog2.pop %v687
      %v719 = vmul.f32 %v718, 0.6931472
      %v720 = vlog2.pop %v689
      %v721 = vmul.f32 %v720, 0.6931472
      %v722 = vlog2.pop %v691
      %v723 = vmul.f32 %v722, 0.6931472
      %v724 = vlog2.pop %v693
      %v725 = vmul.f32 %v724, 0.6931472
      %v726 = vlog2.pop %v695
      %v727 = vmul.f32 %v726, 0.6931472
      %v728 = vlog2.pop %v697
      %v729 = vmul.f32 %v728, 0.6931472
      %v730 = vlog2.pop %v699
      %v731 = vmul.f32 %v730, 0.6931472
      %v732 = vlog2.pop %v701
      %v733 = vmul.f32 %v732, 0.6931472
      %v734 = vlog2.pop %v703
      %v735 = vmul.f32 %v734, 0.6931472
      %v736 = vlog2.pop %v705
      %v737 = vmul.f32 %v736, 0.6931472
      %v738 = vlog2.pop %v707
      %v739 = vmul.f32 %v738, 0.6931472
      %v740 = vadd.f32 %v597, %v709
      %v741 = vadd.f32 %v599, %v711
      %v742 = vadd.f32 %v601, %v713
      %v743 = vadd.f32 %v603, %v715
      %v744 = vadd.f32 %v605, %v717
      %v745 = vadd.f32 %v607, %v719
      %v746 = vadd.f32 %v609, %v721
      %v747 = vadd.f32 %v611, %v723
      %v748 = vadd.f32 %v613, %v725
      %v749 = vadd.f32 %v615, %v727
      %v750 = vadd.f32 %v617, %v729
      %v751 = vadd.f32 %v619, %v731
      %v752 = vadd.f32 %v621, %v733
      %v753 = vadd.f32 %v623, %v735
      %v754 = vadd.f32 %v625, %v737
      %v755 = vadd.f32 %v627, %v739
      %v756 = vsub.f32 %v518, %v740
      %v757 = vsub.f32 %v523, %v741
      %v758 = vsub.f32 %v528, %v742
      %v759 = vsub.f32 %v533, %v743
      %v760 = vsub.f32 %v538, %v744
      %v761 = vsub.f32 %v543, %v745
      %v762 = vsub.f32 %v548, %v746
      %v763 = vsub.f32 %v553, %v747
      %v764 = vsub.f32 %v558, %v748
      %v765 = vsub.f32 %v563, %v749
      %v766 = vsub.f32 %v568, %v750
      %v767 = vsub.f32 %v573, %v751
      %v768 = vsub.f32 %v578, %v752
      %v769 = vsub.f32 %v583, %v753
      %v770 = vsub.f32 %v588, %v754
      %v771 = vsub.f32 %v593, %v755
      %772 = vst [vmem:[%s226] sm:$0xff] %v756
      %773 = vst [vmem:[%s226 + $0x8] sm:$0xff] %v757
      %774 = vst [vmem:[%s226 + $0x10] sm:$0xff] %v758
      %775 = vst [vmem:[%s226 + $0x18] sm:$0xff] %v759
      %776 = vst [vmem:[%s226 + $0x20] sm:$0xff] %v760
      %777 = vst [vmem:[%s226 + $0x28] sm:$0xff] %v761
      %778 = vst [vmem:[%s226 + $0x30] sm:$0xff] %v762
      %779 = vst [vmem:[%s226 + $0x38] sm:$0xff] %v763
      %780 = vst [vmem:[%s226 + $0x40] sm:$0xff] %v764
      %781 = vst [vmem:[%s226 + $0x48] sm:$0xff] %v765
      %782 = vst [vmem:[%s226 + $0x50] sm:$0xff] %v766
      %783 = vst [vmem:[%s226 + $0x58] sm:$0xff] %v767
      %784 = vst [vmem:[%s226 + $0x60] sm:$0xff] %v768
      %785 = vst [vmem:[%s226 + $0x68] sm:$0xff] %v769
      %786 = vst [vmem:[%s226 + $0x70] sm:$0xff] %v770
      %787 = vst [vmem:[%s226 + $0x78] sm:$0xff] %v771
      %s788 = smul.u32 16, %s16
      %p789 = scmp.lt.s32.totalorder %s788, 31
      %s790 = scalar_select %p789, %s788, 31
      %s791 = smul.addr %s790, 8
      %s792 = scalar_lea.vmem %s5, %s791
      // Predicated region
      $region41: #{_ann_forward_impl.1} parent=39 // pred_check
        %p793 = pneg %p144
      $region42: #{_ann_forward_impl.1} parent=39 // pred_check_branch
        %795 = sbr.rel (%p793) target = $region44
      $region43: #{_ann_forward_impl.1} parent=39 // pred_region
        %s796 = smul.u32 16, %s16
      $region44: #{_ann_forward_impl.1} parent=39 // pred_fallthru
        _
    $region40: #{_ann_forward_impl.1} parent=5 // pred_fallthru
      _
    %p797 = scmp.le.s32.totalorder 2, %s11
    // Predicated region
    $region45: #{_ann_forward_impl.1} parent=5 // pred_check
      %p798 = pneg %p797
    $region46: #{_ann_forward_impl.1} parent=5 // pred_check_branch
      %800 = sbr.rel (%p798) target = $region48
    $region47: #{_ann_forward_impl.1} parent=5 // pred_region
      %s801 = ssub.s32 %s11, 2
      // Predicated region
      $region49: #{_ann_forward_impl.1} parent=47 // pred_check
        %p802 = pneg %p150
      $region50: #{_ann_forward_impl.1} parent=47 // pred_check_branch
        %804 = sbr.rel (%p802) target = $region52
      $region51: #{_ann_forward_impl.1} parent=47 // pred_region
        %s805 = smul.u32 16, %s17
        %p806 = scmp.lt.s32.totalorder %s805, 31
        %s807 = scalar_select %p806, %s805, 31
        %s808 = smul.addr %s807, 8
        %s809 = scalar_lea.vmem %s5, %s808
      $region52: #{_ann_forward_impl.1} parent=47 // pred_fallthru
        _
    $region48: #{_ann_forward_impl.1} parent=5 // pred_fallthru
      _
  $region6: #{_ann_forward_impl.1} parent=0 // loop_footer
    %s15 = sadd.s32 1, %s11
  $region7: #{_ann_forward_impl.1} parent=0 // loop_footer_branch
    %10 = sbr.rel target = $region3
  $region8: #{_ann_forward_impl.1} parent=0 // loop_exit
    _

</llo_original>
